<compile_context>
chip_gen: v7x
topology: tpu7x:2x2x1
jax: 0.10.0
libtpu: 0.0.40
codegen_flags: <defaults>
</compile_context>

<pallas_src>
import functools

import jax
import jax.numpy as jnp
from jax.experimental import pallas as pl
from jax.experimental.pallas import tpu as pltpu


# Logical (PyTorch) layer widths and their lane-padded versions.
H1_LOGICAL, H2_LOGICAL = 400, 300
H1_PAD, H2_PAD = 512, 384
ONE1 = H1_PAD - 1   # constant-1 pad channel of layer-1 output (>= 400)
ONE2 = H2_PAD - 1   # constant-1 pad channel of layer-2 output (>= 300)
TB_MAX = 1024       # max batch-tile rows (multiple of 8)


def _bf16_epilogue_default():
    """bf16 ReLU/cast epilogue on v6e/v7x; keep f32 epilogue on v5e (no bf16 VPU)."""
    try:
        kind = jax.devices()[0].device_kind.lower()
    except Exception:
        return True
    return not ("v5 lite" in kind or "v5e" in kind or "v5litepod" in kind)


_BF16_EPILOGUE = _bf16_epilogue_default()


def _round_up(x, m):
    return ((x + m - 1) // m) * m


# ----------------------------------------------------------------------------
# Pallas kernel: both Q towers, one batch tile per grid step.
# All biases are pre-folded into the weights (constant-1 channels), so the
# epilogue is only ReLU + dtype cast.
# ----------------------------------------------------------------------------
def _critic_kernel(xu1_ref, w1_ref, w2_ref, w5_ref, w3_ref, w6_ref, q_ref,
                   *, bf16_epilogue):
    H1 = w2_ref.shape[0]  # padded hidden-1 width (512)

    def relu_cast(acc_f32):
        if bf16_epilogue:
            # v6e/v7x: bf16 VALU -> half the ReLU element-ops; identical numerics.
            return jnp.maximum(acc_f32.astype(jnp.bfloat16), 0.0)
        # v5e: f32-only VPU; ReLU in f32, then cast for the next MXU dot.
        return jnp.maximum(acc_f32, 0.0).astype(jnp.bfloat16)

    xu1 = xu1_ref[...]                                        # (TB, S+A+1) bf16

    # Single fused first layer for BOTH towers (biases ride the ones column).
    h14 = relu_cast(jnp.dot(xu1, w1_ref[...],
                            preferred_element_type=jnp.float32))   # (TB, 2*H1)

    h = h14[:, :H1]                                           # tower 1 hidden
    g = h14[:, H1:]                                           # tower 2 hidden

    h2 = relu_cast(jnp.dot(h, w2_ref[...], preferred_element_type=jnp.float32))
    g2 = relu_cast(jnp.dot(g, w5_ref[...], preferred_element_type=jnp.float32))

    # Final layers: q1 in lane 0, q2 in lane 1 (biases folded into row ONE2).
    q_ref[...] = (jnp.dot(h2, w3_ref[...], preferred_element_type=jnp.float32)
                  + jnp.dot(g2, w6_ref[...], preferred_element_type=jnp.float32))


# ----------------------------------------------------------------------------
# Wrapper: batch-tiled pallas_call with VMEM-resident bf16 weights.
# ----------------------------------------------------------------------------
@jax.jit
def critic_forward(x, u, params):
    x = x.astype(jnp.float32)
    u = u.astype(jnp.float32)
    B = x.shape[0]

    # xu1 = [x | u | 1]; cast to bf16 once so the DMA moves half the bytes and
    # the kernel needs a single first-layer dot.
    ones = jnp.ones((B, 1), jnp.float32)
    xu1 = jnp.concatenate([x, u, ones], axis=1).astype(jnp.bfloat16)
    Din1 = xu1.shape[1]

    # Batch tile: single tile for small B; otherwise at least 2 grid steps
    # (keeps both v7x TensorCores busy) capped at TB_MAX for v5e/v6e.
    if B <= 256:
        TB = B
    else:
        TB = min(TB_MAX, _round_up(pl.cdiv(B, 2), 8))
    grid = (pl.cdiv(B, TB),)

    batch_map = lambda i: (i, 0)   # activations/outputs walk the batch axis
    fixed_map = lambda i: (0, 0)   # weights stay VMEM-resident across the grid

    weights = (params["w1"], params["w2"], params["w5"],
               params["w3"], params["w6"])

    in_specs = ([pl.BlockSpec((TB, Din1), batch_map)]
                + [pl.BlockSpec(w.shape, fixed_map) for w in weights])

    # Advisory cost estimate so XLA can overlap neighbours around this kernel.
    macs_per_row = Din1 * 2 * H1_PAD + 2 * H1_PAD * H2_PAD + 2 * H2_PAD * 2
    weight_bytes = sum(int(w.size) * w.dtype.itemsize for w in weights)
    cost = pl.CostEstimate(
        flops=2 * B * macs_per_row,
        transcendentals=0,
        bytes_accessed=weight_bytes + B * (Din1 * 2 + 2 * 4))

    q = pl.pallas_call(
        functools.partial(_critic_kernel, bf16_epilogue=_BF16_EPILOGUE),
        grid=grid,
        in_specs=in_specs,
        out_specs=pl.BlockSpec((TB, 2), batch_map),
        out_shape=jax.ShapeDtypeStruct((B, 2), jnp.float32),
        compiler_params=pltpu.CompilerParams(
            dimension_semantics=("parallel",),
            vmem_limit_bytes=48 * 1024 * 1024),
        cost_estimate=cost,
    )(xu1, *weights)

    return q[:, 0:1], q[:, 1:2]


# ----------------------------------------------------------------------------
# Parameter init (PyTorch nn.Linear default: U(-k, k), k = 1/sqrt(fan_in)),
# stored as (in, out) so forward is y = x @ W + b.
# ----------------------------------------------------------------------------
def init_logical_params(key, state_dim, action_dim):
    dims = [
        ("w1", "b1", state_dim + action_dim, H1_LOGICAL),
        ("w2", "b2", H1_LOGICAL, H2_LOGICAL),
        ("w3", "b3", H2_LOGICAL, 1),
        ("w4", "b4", state_dim + action_dim, H1_LOGICAL),
        ("w5", "b5", H1_LOGICAL, H2_LOGICAL),
        ("w6", "b6", H2_LOGICAL, 1),
    ]
    params = {}
    for wname, bname, fan_in, fan_out in dims:
        key, kw, kb = jax.random.split(key, 3)
        bound = 1.0 / (fan_in ** 0.5)
        params[wname] = jax.random.uniform(
            kw, (fan_in, fan_out), jnp.float32, minval=-bound, maxval=bound)
        params[bname] = jax.random.uniform(
            kb, (fan_out,), jnp.float32, minval=-bound, maxval=bound)
    return params


def pack_params(p, state_dim, action_dim):
    """Pad to lane multiples, fuse the two first layers into one weight, and
    fold every bias into the weights via constant-1 pad channels (bf16)."""
    S, A = state_dim, action_dim
    din1 = S + A + 1   # + ones column (carries the layer-1 biases)

    # --- Fused first layer: (S+A+1, 2*H1_PAD); tower 1 cols [0,512), tower 2
    #     cols [512,1024).  Last input row = biases (multiplied by the ones
    #     column) and the 1.0 seed of each tower's constant-1 pad channel.
    w1 = jnp.zeros((din1, 2 * H1_PAD), jnp.float32)
    w1 = w1.at[:S + A, :H1_LOGICAL].set(p["w1"])
    w1 = w1.at[:S + A, H1_PAD:H1_PAD + H1_LOGICAL].set(p["w4"])
    w1 = w1.at[S + A, :H1_LOGICAL].set(p["b1"])
    w1 = w1.at[S + A, H1_PAD:H1_PAD + H1_LOGICAL].set(p["b4"])
    w1 = w1.at[S + A, ONE1].set(1.0)
    w1 = w1.at[S + A, H1_PAD + ONE1].set(1.0)

    # --- Layer 2 per tower: (H1_PAD, H2_PAD); bias in row ONE1 (the constant-1
    #     hidden channel), and a 1.0 at [ONE1, ONE2] to seed the next constant.
    def pack_l2(w, b):
        m = jnp.zeros((H1_PAD, H2_PAD), jnp.float32)
        m = m.at[:H1_LOGICAL, :H2_LOGICAL].set(w)
        m = m.at[ONE1, :H2_LOGICAL].set(b)
        m = m.at[ONE1, ONE2].set(1.0)
        return m

    # --- Layer 3: (H2_PAD, 2); q1 -> lane 0, q2 -> lane 1; bias in row ONE2.
    def pack_l3(w, b, lane):
        m = jnp.zeros((H2_PAD, 2), jnp.float32)
        m = m.at[:H2_LOGICAL, lane].set(w[:, 0])
        m = m.at[ONE2, lane].set(b[0])
        return m

    return {
        "w1": w1.astype(jnp.bfloat16),                          # (S+A+1, 1024)
        "w2": pack_l2(p["w2"], p["b2"]).astype(jnp.bfloat16),   # (512, 384)
        "w5": pack_l2(p["w5"], p["b5"]).astype(jnp.bfloat16),   # (512, 384)
        "w3": pack_l3(p["w3"], p["b3"], 0).astype(jnp.bfloat16),  # (384, 2)
        "w6": pack_l3(p["w6"], p["b6"], 1).astype(jnp.bfloat16),  # (384, 2)
    }


# ----------------------------------------------------------------------------
# Pure-JAX references.
# ----------------------------------------------------------------------------
def critic_forward_ref_f32(x, u, p):
    xu = jnp.concatenate([x, u], axis=1)
    h = jnp.maximum(xu @ p["w1"] + p["b1"], 0.0)
    h = jnp.maximum(h @ p["w2"] + p["b2"], 0.0)
    q1 = h @ p["w3"] + p["b3"]
    g = jnp.maximum(xu @ p["w4"] + p["b4"], 0.0)
    g = jnp.maximum(g @ p["w5"] + p["b5"], 0.0)
    q2 = g @ p["w6"] + p["b6"]
    return q1, q2


def critic_forward_ref_bf16(x, u, p):
    """Emulates kernel precision: bf16 weights *and* biases, f32 accumulation."""
    def lin(a, w, b):
        acc = jnp.dot(a.astype(jnp.bfloat16), w.astype(jnp.bfloat16),
                      preferred_element_type=jnp.float32)
        return acc + b.astype(jnp.bfloat16).astype(jnp.float32)
    xu = jnp.concatenate([x, u], axis=1)
    h = jnp.maximum(lin(xu, p["w1"], p["b1"]), 0.0)
    h = jnp.maximum(lin(h, p["w2"], p["b2"]), 0.0)
    q1 = lin(h, p["w3"], p["b3"])
    g = jnp.maximum(lin(xu, p["w4"], p["b4"]), 0.0)
    g = jnp.maximum(lin(g, p["w5"], p["b5"]), 0.0)
    q2 = lin(g, p["w6"], p["b6"])
    return q1, q2


if __name__ == "__main__":
    key = jax.random.PRNGKey(0)
    state_dim, action_dim = 8, 4

    kp, kx, ku = jax.random.split(key, 3)
    logical = init_logical_params(kp, state_dim, action_dim)
    params = pack_params(logical, state_dim, action_dim)

    # batch=2: tiny single-tile case.  batch=600: multi-step grid with a
    # partial last tile (TB=304) to exercise the OOB-masking path.
    for batch in (2, 600):
        kxb, kub = jax.random.split(jax.random.fold_in(kx, batch))
        x = jax.random.normal(kxb, (batch, state_dim), jnp.float32)
        u = jax.random.normal(kub, (batch, action_dim), jnp.float32)

        q1, q2 = critic_forward(x, u, params)
        jax.block_until_ready((q1, q2))

        rq1, rq2 = critic_forward_ref_bf16(x, u, logical)
        fq1, fq2 = critic_forward_ref_f32(x, u, logical)

        assert q1.shape == (batch, 1) and q2.shape == (batch, 1)
        # Tight check vs. a reference with the same bf16-weight/bias precision.
        assert jnp.allclose(q1, rq1, atol=2e-3, rtol=2e-3)
        assert jnp.allclose(q2, rq2, atol=2e-3, rtol=2e-3)
        # Loose sanity check vs. the full-f32 reference (bf16 rounding only).
        assert jnp.allclose(q1, fq1, atol=5e-2, rtol=5e-2)
        assert jnp.allclose(q2, fq2, atol=5e-2, rtol=5e-2)

    print("KERNEL_OK")
</pallas_src>

<mosaic_0001>
module attributes {stable_mosaic.version = 11 : i64} {
  func.func @_critic_kernel(%arg0: i32, %arg1: memref<2x13xbf16, #tpu.memory_space<vmem>>, %arg2: memref<13x1024xbf16, #tpu.memory_space<vmem>>, %arg3: memref<512x384xbf16, #tpu.memory_space<vmem>>, %arg4: memref<512x384xbf16, #tpu.memory_space<vmem>>, %arg5: memref<384x2xbf16, #tpu.memory_space<vmem>>, %arg6: memref<384x2xbf16, #tpu.memory_space<vmem>>, %arg7: memref<2x2xf32, #tpu.memory_space<vmem>>) attributes {dimension_semantics = [#tpu.dimension_semantics<parallel>], iteration_bounds = array<i64: 1>, scalar_prefetch = 0 : i64, scratch_operands = 0 : i64, tpu.core_type = #tpu.core_type<tc>, window_params = [{transform_indices = @transform_0, window_bounds = array<i64: 2, 13>}, {pipeline_mode = #tpu.pipeline_mode<synchronous>, transform_indices = @transform_1, window_bounds = array<i64: 13, 1024>}, {pipeline_mode = #tpu.pipeline_mode<synchronous>, transform_indices = @transform_2, window_bounds = array<i64: 512, 384>}, {pipeline_mode = #tpu.pipeline_mode<synchronous>, transform_indices = @transform_3, window_bounds = array<i64: 512, 384>}, {pipeline_mode = #tpu.pipeline_mode<synchronous>, transform_indices = @transform_4, window_bounds = array<i64: 384, 2>}, {pipeline_mode = #tpu.pipeline_mode<synchronous>, transform_indices = @transform_5, window_bounds = array<i64: 384, 2>}, {transform_indices = @transform_6, window_bounds = array<i64: 2, 2>}]} {
    %c0 = arith.constant 0 : index
    %c0_0 = arith.constant 0 : index
    %0 = vector.load %arg1[%c0, %c0_0] : memref<2x13xbf16, #tpu.memory_space<vmem>>, vector<2x13xbf16>
    %c0_1 = arith.constant 0 : index
    %c0_2 = arith.constant 0 : index
    %1 = vector.load %arg2[%c0_1, %c0_2] : memref<13x1024xbf16, #tpu.memory_space<vmem>>, vector<13x1024xbf16>
    %cst = arith.constant dense<0.000000e+00> : vector<2x1024xf32>
    %2 = tpu.matmul %0, %1, %cst {dimension_numbers = #tpu.dot_dimension_numbers<[1], [0], [0], [1], [0, 0, 1, 1], [], []>} : vector<2x13xbf16>, vector<13x1024xbf16>, vector<2x1024xf32> -> vector<2x1024xf32>
    %3 = arith.truncf %2 : vector<2x1024xf32> to vector<2x1024xbf16>
    %cst_3 = arith.constant 0.000000e+00 : bf16
    %4 = vector.broadcast %cst_3 : bf16 to vector<2x1024xbf16>
    %5 = arith.maximumf %3, %4 : vector<2x1024xbf16>
    %6 = vector.extract_strided_slice %5 {offsets = [0, 0], sizes = [2, 512], strides = [1, 1]} : vector<2x1024xbf16> to vector<2x512xbf16>
    %7 = vector.extract_strided_slice %5 {offsets = [0, 512], sizes = [2, 512], strides = [1, 1]} : vector<2x1024xbf16> to vector<2x512xbf16>
    %c0_4 = arith.constant 0 : index
    %c0_5 = arith.constant 0 : index
    %8 = vector.load %arg3[%c0_4, %c0_5] : memref<512x384xbf16, #tpu.memory_space<vmem>>, vector<512x384xbf16>
    %cst_6 = arith.constant dense<0.000000e+00> : vector<2x384xf32>
    %9 = tpu.matmul %6, %8, %cst_6 {dimension_numbers = #tpu.dot_dimension_numbers<[1], [0], [0], [1], [0, 0, 1, 1], [], []>} : vector<2x512xbf16>, vector<512x384xbf16>, vector<2x384xf32> -> vector<2x384xf32>
    %10 = arith.truncf %9 : vector<2x384xf32> to vector<2x384xbf16>
    %cst_7 = arith.constant 0.000000e+00 : bf16
    %11 = vector.broadcast %cst_7 : bf16 to vector<2x384xbf16>
    %12 = arith.maximumf %10, %11 : vector<2x384xbf16>
    %c0_8 = arith.constant 0 : index
    %c0_9 = arith.constant 0 : index
    %13 = vector.load %arg4[%c0_8, %c0_9] : memref<512x384xbf16, #tpu.memory_space<vmem>>, vector<512x384xbf16>
    %cst_10 = arith.constant dense<0.000000e+00> : vector<2x384xf32>
    %14 = tpu.matmul %7, %13, %cst_10 {dimension_numbers = #tpu.dot_dimension_numbers<[1], [0], [0], [1], [0, 0, 1, 1], [], []>} : vector<2x512xbf16>, vector<512x384xbf16>, vector<2x384xf32> -> vector<2x384xf32>
    %15 = arith.truncf %14 : vector<2x384xf32> to vector<2x384xbf16>
    %cst_11 = arith.constant 0.000000e+00 : bf16
    %16 = vector.broadcast %cst_11 : bf16 to vector<2x384xbf16>
    %17 = arith.maximumf %15, %16 : vector<2x384xbf16>
    %c0_12 = arith.constant 0 : index
    %c0_13 = arith.constant 0 : index
    %18 = vector.load %arg5[%c0_12, %c0_13] : memref<384x2xbf16, #tpu.memory_space<vmem>>, vector<384x2xbf16>
    %cst_14 = arith.constant dense<0.000000e+00> : vector<2x2xf32>
    %19 = tpu.matmul %12, %18, %cst_14 {dimension_numbers = #tpu.dot_dimension_numbers<[1], [0], [0], [1], [0, 0, 1, 1], [], []>} : vector<2x384xbf16>, vector<384x2xbf16>, vector<2x2xf32> -> vector<2x2xf32>
    %c0_15 = arith.constant 0 : index
    %c0_16 = arith.constant 0 : index
    %20 = vector.load %arg6[%c0_15, %c0_16] : memref<384x2xbf16, #tpu.memory_space<vmem>>, vector<384x2xbf16>
    %cst_17 = arith.constant dense<0.000000e+00> : vector<2x2xf32>
    %21 = tpu.matmul %17, %20, %cst_17 {dimension_numbers = #tpu.dot_dimension_numbers<[1], [0], [0], [1], [0, 0, 1, 1], [], []>} : vector<2x384xbf16>, vector<384x2xbf16>, vector<2x2xf32> -> vector<2x2xf32>
    %22 = arith.addf %19, %21 : vector<2x2xf32>
    %c0_18 = arith.constant 0 : index
    %c0_19 = arith.constant 0 : index
    %23 = vector.load %arg7[%c0_18, %c0_19] : memref<2x2xf32, #tpu.memory_space<vmem>>, vector<2x2xf32>
    tpu.vector_store %arg7[%c0_18, %c0_19], %22 {strides = array<i32>} : memref<2x2xf32, #tpu.memory_space<vmem>>, vector<2x2xf32>,
    return
  }
  func.func @transform_0(%arg0: i32) -> (i32, i32) {
    %c0_i32 = arith.constant 0 : i32
    %c0_i32_0 = arith.constant 0 : i32
    return %arg0, %c0_i32 : i32, i32
  }
  func.func @transform_1(%arg0: i32) -> (i32, i32) {
    %c0_i32 = arith.constant 0 : i32
    %c0_i32_0 = arith.constant 0 : i32
    %c0_i32_1 = arith.constant 0 : i32
    return %c0_i32, %c0_i32_0 : i32, i32
  }
  func.func @transform_2(%arg0: i32) -> (i32, i32) {
    %c0_i32 = arith.constant 0 : i32
    %c0_i32_0 = arith.constant 0 : i32
    %c0_i32_1 = arith.constant 0 : i32
    return %c0_i32, %c0_i32_0 : i32, i32
  }
  func.func @transform_3(%arg0: i32) -> (i32, i32) {
    %c0_i32 = arith.constant 0 : i32
    %c0_i32_0 = arith.constant 0 : i32
    %c0_i32_1 = arith.constant 0 : i32
    return %c0_i32, %c0_i32_0 : i32, i32
  }
  func.func @transform_4(%arg0: i32) -> (i32, i32) {
    %c0_i32 = arith.constant 0 : i32
    %c0_i32_0 = arith.constant 0 : i32
    %c0_i32_1 = arith.constant 0 : i32
    return %c0_i32, %c0_i32_0 : i32, i32
  }
  func.func @transform_5(%arg0: i32) -> (i32, i32) {
    %c0_i32 = arith.constant 0 : i32
    %c0_i32_0 = arith.constant 0 : i32
    %c0_i32_1 = arith.constant 0 : i32
    return %c0_i32, %c0_i32_0 : i32, i32
  }
  func.func @transform_6(%arg0: i32) -> (i32, i32) {
    %c0_i32 = arith.constant 0 : i32
    %c0_i32_0 = arith.constant 0 : i32
    return %arg0, %c0_i32 : i32, i32
  }
}

</mosaic_0001>

<llo_original>
// kernel: critic_forward.1
$region0: #{critic_forward.1}
  #allocation0 [shape = 'u32[]', space=smem, size = 0x4, offset = 0x4, fixed_abs, tag = 'smem constant byte address 0x4 - core index']
  #allocation1 [shape = 'u32[144,128]{1,0:T(1,128)}', space=vmem, size = 0x12000, scoped, tag = 'internal scratch']
  %s0 = inlined_call_operand.vmem [shape: bf16[2,13], index: 0, kind: input, shape index: {}]
  %s1 = inlined_call_operand.vmem [shape: bf16[13,1024], index: 1, kind: input, shape index: {}]
  %s2 = inlined_call_operand.hbm [shape: bf16[512,384], index: 2, kind: input, shape index: {}]
  %s3 = inlined_call_operand.hbm [shape: bf16[512,384], index: 3, kind: input, shape index: {}]
  %s4 = inlined_call_operand.vmem [shape: bf16[384,2], index: 4, kind: input, shape index: {}]
  %s5 = inlined_call_operand.vmem [shape: bf16[384,2], index: 5, kind: input, shape index: {}]
  %s6 = inlined_call_operand.vmem [shape: f32[2,2], index: 6, kind: output, shape index: {}]
  %s7 = sld [smem:[#allocation0]]
  $region42: #{critic_forward.1} parent=0
    _
  %s9 = ssub.s32 1, %s7
  %s10 = scalar_select 0, %s9, %s7
  $region1: #{critic_forward.1} parent=0
    #allocation2 [shape = 'u8[393216]{0}', space=vmem, size = 0x60000, scoped, tag = 'input window, operand 2, single buffered']
    #allocation3 [shape = 's32[1]{0}', space=sflag, size = 0x4, scoped, tag = 'scoped memory for critic_forward.1']
    #allocation4 [shape = 'u8[393216]{0}', space=vmem, size = 0x60000, scoped, tag = 'input window, operand 3, single buffered']
    #allocation5 [shape = 's32[1]{0}', space=sflag, size = 0x4, scoped, tag = 'scoped memory for critic_forward.1']
    %11 = vsyncpa [#allocation3], 0
    %12 = vsyncpa [#allocation5], 0
    // Predicated region
    $region2: #{critic_forward.1} parent=1 // pred_check
      _
    $region3: #{critic_forward.1} parent=1 // pred_check_branch
      %14 = sbr.rel (0) target = $region5
    $region4: #{critic_forward.1} parent=1 // pred_region
      _
    $region5: #{critic_forward.1} parent=1 // pred_fallthru
      _
    // Predicated region
    $region6: #{critic_forward.1} parent=1 // pred_check
      _
    $region7: #{critic_forward.1} parent=1 // pred_check_branch
      %16 = sbr.rel (0) target = $region9
    $region8: #{critic_forward.1} parent=1 // pred_region
      _
    $region9: #{critic_forward.1} parent=1 // pred_fallthru
      _
    // Predicated region
    $region10: #{critic_forward.1} parent=1 // pred_check
      _
    $region11: #{critic_forward.1} parent=1 // pred_check_branch
      %18 = sbr.rel (0) target = $region13
    $region12: #{critic_forward.1} parent=1 // pred_region
      %s20 = ssub.s32 12288, 12288
      %21 = vsyncadd [#allocation3], %s20
      %s22 = sshll.u32 [#allocation2], 4
      %s23 = int_to_ptr.vmem [resolvable:$true] %s22
      %28 = dma.hbm_to_vmem [thread:$0]  %s2, 12288, %s23, [#allocation3], 192, 192, 12
    $region13: #{critic_forward.1} parent=1 // pred_fallthru
      _
    // Predicated region
    $region14: #{critic_forward.1} parent=1 // pred_check
      _
    $region15: #{critic_forward.1} parent=1 // pred_check_branch
      %30 = sbr.rel (0) target = $region17
    $region16: #{critic_forward.1} parent=1 // pred_region
      %s32 = ssub.s32 12288, 12288
      %33 = vsyncadd [#allocation5], %s32
      %s34 = sshll.u32 [#allocation4], 4
      %s35 = int_to_ptr.vmem [resolvable:$true] %s34
      %40 = dma.hbm_to_vmem [thread:$0]  %s3, 12288, %s35, [#allocation5], 192, 192, 12
    $region17: #{critic_forward.1} parent=1 // pred_fallthru
      _
    // Predicated region
    $region18: #{critic_forward.1} parent=1 // pred_check
      _
    $region19: #{critic_forward.1} parent=1 // pred_check_branch
      %42 = sbr.rel (0) target = $region21
    $region20: #{critic_forward.1} parent=1 // pred_region
      _
    $region21: #{critic_forward.1} parent=1 // pred_fallthru
      _
    // Predicated region
    $region22: #{critic_forward.1} parent=1 // pred_check
      _
    $region23: #{critic_forward.1} parent=1 // pred_check_branch
      %44 = sbr.rel (0) target = $region25
    $region24: #{critic_forward.1} parent=1 // pred_region
      _
    $region25: #{critic_forward.1} parent=1 // pred_fallthru
      _
    // Predicated region
    $region26: #{critic_forward.1} parent=1 // pred_check
      _
    $region27: #{critic_forward.1} parent=1 // pred_check_branch
      %46 = sbr.rel (0) target = $region29
    $region28: #{critic_forward.1} parent=1 // pred_region
      %47 = dma.done [#allocation3], 12288
    $region29: #{critic_forward.1} parent=1 // pred_fallthru
      _
    // Predicated region
    $region30: #{critic_forward.1} parent=1 // pred_check
      _
    $region31: #{critic_forward.1} parent=1 // pred_check_branch
      %49 = sbr.rel (0) target = $region33
    $region32: #{critic_forward.1} parent=1 // pred_region
      %50 = dma.done [#allocation5], 12288
    $region33: #{critic_forward.1} parent=1 // pred_fallthru
      _
    %v52 = vld [vmem:[%s0] sm:$0x1]
    %v53 = vld [vmem:[%s1] sm:$0xff]
    %v54 = vld [vmem:[%s1 + $0x8] sm:$0xff]
    %v55 = vld [vmem:[%s1 + $0x10] sm:$0xff]
    %v56 = vld [vmem:[%s1 + $0x18] sm:$0xff]
    %v57 = vld [vmem:[%s1 + $0x20] sm:$0x77]
    %v58 = vld [vmem:[%s1 + $0x28] sm:$0x77]
    %v59 = vld [vmem:[%s1 + $0x30] sm:$0x77]
    %v60 = vld [vmem:[%s1 + $0x38] sm:$0x77]
    %v69 = vunpack.c.l.b16 %v53
    %v70 = vunpack.c.h.b16 %v53
    %v71 = vunpack.c.l.b16 %v54
    %v72 = vunpack.c.h.b16 %v54
    %v73 = vunpack.c.l.b16 %v55
    %v74 = vunpack.c.h.b16 %v55
    %v75 = vunpack.c.l.b16 %v56
    %v76 = vunpack.c.h.b16 %v56
    %v77 = vunpack.c.l.b16 %v57
    %v78 = vunpack.c.h.b16 %v57
    %v79 = vunpack.c.l.b16 %v58
    %v80 = vunpack.c.h.b16 %v58
    %v81 = vunpack.c.l.b16 %v59
    %v82 = vunpack.c.h.b16 %v59
    %v83 = vunpack.c.l.b16 %v60
    %v84 = vunpack.c.h.b16 %v60
    %v85 = vpack.c.b16 %v77, %v69
    %v86 = vpack.c.b16 %v78, %v70
    %v87 = vpack.c.b16 %v79, %v71
    %v88 = vpack.c.b16 %v80, %v72
    %v89 = vpack.c.b16 %v81, %v73
    %v90 = vpack.c.b16 %v82, %v74
    %v91 = vpack.c.b16 %v83, %v75
    %v92 = vpack.c.b16 %v84, %v76
    %vm93 = vcmask 105472
    %v95 = vsel %vm93, %v52, 0
    %vm97 = vcmask 1045504
    %vm98 = vcmask 1046528
    %v99 = vsel %vm97, 4294967295, 65535
    %v100 = vsel %vm98, %v99, 0
    %v102 = vand.u32 %v85, %v100
    %v105 = vand.u32 %v86, %v100
    %v108 = vand.u32 %v87, %v100
    %v111 = vand.u32 %v88, %v100
    %v114 = vand.u32 %v89, %v100
    %v117 = vand.u32 %v90, %v100
    %v120 = vand.u32 %v91, %v100
    %v123 = vand.u32 %v92, %v100
    %125 = vmatprep.subr.bf16.mxu0 %v105
    %126 = vmatpush1.bf16.msra.mxu0 %v102
    %127 = vmatprep.subr.bf16.mxu0 0
    %128 = vmatpush1.bf16.msra.mxu0 0
    %129 = vmatprep.subr.bf16.mxu0 0
    %130 = vmatpush1.bf16.msra.mxu0 0
    %131 = vmatprep.subr.bf16.mxu0 0
    %132 = vmatpush1.bf16.msra.mxu0 0
    %133 = vmatprep.subr.bf16.mxu0 0
    %134 = vmatpush1.bf16.msra.mxu0 0
    %135 = vmatprep.subr.bf16.mxu0 0
    %136 = vmatpush1.bf16.msra.mxu0 0
    %137 = vmatprep.subr.bf16.mxu0 0
    %138 = vmatpush1.bf16.msra.mxu0 0
    %139 = vmatprep.subr.bf16.mxu0 0
    %140 = vmatpush1.bf16.msra.mxu0 0
    %141 = vmatprep.subr.bf16.mxu0 0
    %142 = vmatpush1.bf16.msra.mxu0 0
    %143 = vmatprep.subr.bf16.mxu0 0
    %144 = vmatpush1.bf16.msra.mxu0 0
    %145 = vmatprep.subr.bf16.mxu0 0
    %146 = vmatpush1.bf16.msra.mxu0 0
    %147 = vmatprep.subr.bf16.mxu0 0
    %148 = vmatpush1.bf16.msra.mxu0 0
    %149 = vmatprep.subr.bf16.mxu0 0
    %150 = vmatpush1.bf16.msra.mxu0 0
    %151 = vmatprep.subr.bf16.mxu0 0
    %152 = vmatpush1.bf16.msra.mxu0 0
    %153 = vmatprep.subr.bf16.mxu0 0
    %154 = vmatpush1.bf16.msra.mxu0 0
    %155 = vmatprep.subr.bf16.mxu0 0
    %156 = vmatpush1.bf16.msra.mxu0 0
    %157 = vmatprep.mubr.bf16.mxu0 0
    %158 = vmatmul.mubr.bf16.gmra.mrb[0].mxu0 %v95
    %v159 = vpop.f32.mrb[0].mxu0
    %v160 = vadd.f32 0.0, %v159
    %v161 = vpop.f32.mrb[0].mxu0
    %v162 = vadd.f32 0.0, %v161
    %v163 = vpop.f32.mrb[0].mxu0
    %v164 = vpop.f32.mrb[0].mxu0
    %165 = vdwg.mxu0
    %166 = vmatprep.subr.bf16.mxu0 %v111
    %167 = vmatpush1.bf16.msra.mxu0 %v108
    %168 = vmatprep.subr.bf16.mxu0 0
    %169 = vmatpush1.bf16.msra.mxu0 0
    %170 = vmatprep.subr.bf16.mxu0 0
    %171 = vmatpush1.bf16.msra.mxu0 0
    %172 = vmatprep.subr.bf16.mxu0 0
    %173 = vmatpush1.bf16.msra.mxu0 0
    %174 = vmatprep.subr.bf16.mxu0 0
    %175 = vmatpush1.bf16.msra.mxu0 0
    %176 = vmatprep.subr.bf16.mxu0 0
    %177 = vmatpush1.bf16.msra.mxu0 0
    %178 = vmatprep.subr.bf16.mxu0 0
    %179 = vmatpush1.bf16.msra.mxu0 0
    %180 = vmatprep.subr.bf16.mxu0 0
    %181 = vmatpush1.bf16.msra.mxu0 0
    %182 = vmatprep.subr.bf16.mxu0 0
    %183 = vmatpush1.bf16.msra.mxu0 0
    %184 = vmatprep.subr.bf16.mxu0 0
    %185 = vmatpush1.bf16.msra.mxu0 0
    %186 = vmatprep.subr.bf16.mxu0 0
    %187 = vmatpush1.bf16.msra.mxu0 0
    %188 = vmatprep.subr.bf16.mxu0 0
    %189 = vmatpush1.bf16.msra.mxu0 0
    %190 = vmatprep.subr.bf16.mxu0 0
    %191 = vmatpush1.bf16.msra.mxu0 0
    %192 = vmatprep.subr.bf16.mxu0 0
    %193 = vmatpush1.bf16.msra.mxu0 0
    %194 = vmatprep.subr.bf16.mxu0 0
    %195 = vmatpush1.bf16.msra.mxu0 0
    %196 = vmatprep.subr.bf16.mxu0 0
    %197 = vmatpush1.bf16.msra.mxu0 0
    %198 = vmatprep.mubr.bf16.mxu0 0
    %199 = vmatmul.mubr.bf16.gmra.mrb[0].mxu0 %v95
    %v200 = vpop.f32.mrb[0].mxu0
    %v201 = vadd.f32 0.0, %v200
    %v202 = vpop.f32.mrb[0].mxu0
    %v203 = vadd.f32 0.0, %v202
    %v204 = vpop.f32.mrb[0].mxu0
    %v205 = vpop.f32.mrb[0].mxu0
    %206 = vdwg.mxu0
    %207 = vmatprep.subr.bf16.mxu0 %v117
    %208 = vmatpush1.bf16.msra.mxu0 %v114
    %209 = vmatprep.subr.bf16.mxu0 0
    %210 = vmatpush1.bf16.msra.mxu0 0
    %211 = vmatprep.subr.bf16.mxu0 0
    %212 = vmatpush1.bf16.msra.mxu0 0
    %213 = vmatprep.subr.bf16.mxu0 0
    %214 = vmatpush1.bf16.msra.mxu0 0
    %215 = vmatprep.subr.bf16.mxu0 0
    %216 = vmatpush1.bf16.msra.mxu0 0
    %217 = vmatprep.subr.bf16.mxu0 0
    %218 = vmatpush1.bf16.msra.mxu0 0
    %219 = vmatprep.subr.bf16.mxu0 0
    %220 = vmatpush1.bf16.msra.mxu0 0
    %221 = vmatprep.subr.bf16.mxu0 0
    %222 = vmatpush1.bf16.msra.mxu0 0
    %223 = vmatprep.subr.bf16.mxu0 0
    %224 = vmatpush1.bf16.msra.mxu0 0
    %225 = vmatprep.subr.bf16.mxu0 0
    %226 = vmatpush1.bf16.msra.mxu0 0
    %227 = vmatprep.subr.bf16.mxu0 0
    %228 = vmatpush1.bf16.msra.mxu0 0
    %229 = vmatprep.subr.bf16.mxu0 0
    %230 = vmatpush1.bf16.msra.mxu0 0
    %231 = vmatprep.subr.bf16.mxu0 0
    %232 = vmatpush1.bf16.msra.mxu0 0
    %233 = vmatprep.subr.bf16.mxu0 0
    %234 = vmatpush1.bf16.msra.mxu0 0
    %235 = vmatprep.subr.bf16.mxu0 0
    %236 = vmatpush1.bf16.msra.mxu0 0
    %237 = vmatprep.subr.bf16.mxu0 0
    %238 = vmatpush1.bf16.msra.mxu0 0
    %239 = vmatprep.mubr.bf16.mxu0 0
    %240 = vmatmul.mubr.bf16.gmra.mrb[0].mxu0 %v95
    %v241 = vpop.f32.mrb[0].mxu0
    %v242 = vadd.f32 0.0, %v241
    %v243 = vpop.f32.mrb[0].mxu0
    %v244 = vadd.f32 0.0, %v243
    %v245 = vpop.f32.mrb[0].mxu0
    %v246 = vpop.f32.mrb[0].mxu0
    %247 = vdwg.mxu0
    %248 = vmatprep.subr.bf16.mxu0 %v123
    %249 = vmatpush1.bf16.msra.mxu0 %v120
    %250 = vmatprep.subr.bf16.mxu0 0
    %251 = vmatpush1.bf16.msra.mxu0 0
    %252 = vmatprep.subr.bf16.mxu0 0
    %253 = vmatpush1.bf16.msra.mxu0 0
    %254 = vmatprep.subr.bf16.mxu0 0
    %255 = vmatpush1.bf16.msra.mxu0 0
    %256 = vmatprep.subr.bf16.mxu0 0
    %257 = vmatpush1.bf16.msra.mxu0 0
    %258 = vmatprep.subr.bf16.mxu0 0
    %259 = vmatpush1.bf16.msra.mxu0 0
    %260 = vmatprep.subr.bf16.mxu0 0
    %261 = vmatpush1.bf16.msra.mxu0 0
    %262 = vmatprep.subr.bf16.mxu0 0
    %263 = vmatpush1.bf16.msra.mxu0 0
    %264 = vmatprep.subr.bf16.mxu0 0
    %265 = vmatpush1.bf16.msra.mxu0 0
    %266 = vmatprep.subr.bf16.mxu0 0
    %267 = vmatpush1.bf16.msra.mxu0 0
    %268 = vmatprep.subr.bf16.mxu0 0
    %269 = vmatpush1.bf16.msra.mxu0 0
    %270 = vmatprep.subr.bf16.mxu0 0
    %271 = vmatpush1.bf16.msra.mxu0 0
    %272 = vmatprep.subr.bf16.mxu0 0
    %273 = vmatpush1.bf16.msra.mxu0 0
    %274 = vmatprep.subr.bf16.mxu0 0
    %275 = vmatpush1.bf16.msra.mxu0 0
    %276 = vmatprep.subr.bf16.mxu0 0
    %277 = vmatpush1.bf16.msra.mxu0 0
    %278 = vmatprep.subr.bf16.mxu0 0
    %279 = vmatpush1.bf16.msra.mxu0 0
    %280 = vmatprep.mubr.bf16.mxu0 0
    %281 = vmatmul.mubr.bf16.gmra.mrb[0].mxu0 %v95
    %v282 = vpop.f32.mrb[0].mxu0
    %v283 = vadd.f32 0.0, %v282
    %v284 = vpop.f32.mrb[0].mxu0
    %v285 = vadd.f32 0.0, %v284
    %v286 = vpop.f32.mrb[0].mxu0
    %v287 = vpop.f32.mrb[0].mxu0
    %288 = vdwg.mxu0
    %v289 = vpack.c.bf16 %v160, %v160
    %v290 = vpack.c.bf16 %v162, %v162
    %v291 = vpack.c.bf16 %v201, %v201
    %v292 = vpack.c.bf16 %v203, %v203
    %v293 = vpack.c.bf16 %v242, %v242
    %v294 = vpack.c.bf16 %v244, %v244
    %v295 = vpack.c.bf16 %v283, %v283
    %v296 = vpack.c.bf16 %v285, %v285
    %v297 = vmax.bf16 %v289, 0
    %v298 = vmax.bf16 %v290, 0
    %v299 = vmax.bf16 %v291, 0
    %v300 = vmax.bf16 %v292, 0
    %v301 = vmax.bf16 %v293, 0
    %v302 = vmax.bf16 %v294, 0
    %v303 = vmax.bf16 %v295, 0
    %v304 = vmax.bf16 %v296, 0
    %v305 = vld [vmem:[#allocation2] sm:$0xff]
    %v306 = vld [vmem:[#allocation2 + $0x8] sm:$0xf]
    %v307 = vld [vmem:[#allocation2 + $0xc] sm:$0xff]
    %v308 = vld [vmem:[#allocation2 + $0x14] sm:$0xf]
    %v309 = vld [vmem:[#allocation2 + $0x18] sm:$0xff]
    %v310 = vld [vmem:[#allocation2 + $0x20] sm:$0xf]
    %v311 = vld [vmem:[#allocation2 + $0x24] sm:$0xff]
    %v312 = vld [vmem:[#allocation2 + $0x2c] sm:$0xf]
    %v313 = vld [vmem:[#allocation2 + $0x30] sm:$0xff]
    %v314 = vld [vmem:[#allocation2 + $0x38] sm:$0xf]
    %v315 = vld [vmem:[#allocation2 + $0x3c] sm:$0xff]
    %v316 = vld [vmem:[#allocation2 + $0x44] sm:$0xf]
    %v317 = vld [vmem:[#allocation2 + $0x48] sm:$0xff]
    %v318 = vld [vmem:[#allocation2 + $0x50] sm:$0xf]
    %v319 = vld [vmem:[#allocation2 + $0x54] sm:$0xff]
    %v320 = vld [vmem:[#allocation2 + $0x5c] sm:$0xf]
    %v321 = vld [vmem:[#allocation2 + $0x60] sm:$0xff]
    %v322 = vld [vmem:[#allocation2 + $0x68] sm:$0xf]
    %v323 = vld [vmem:[#allocation2 + $0x6c] sm:$0xff]
    %v324 = vld [vmem:[#allocation2 + $0x74] sm:$0xf]
    %v325 = vld [vmem:[#allocation2 + $0x78] sm:$0xff]
    %v326 = vld [vmem:[#allocation2 + $0x80] sm:$0xf]
    %v327 = vld [vmem:[#allocation2 + $0x84] sm:$0xff]
    %v328 = vld [vmem:[#allocation2 + $0x8c] sm:$0xf]
    %v329 = vld [vmem:[#allocation2 + $0x90] sm:$0xff]
    %v330 = vld [vmem:[#allocation2 + $0x98] sm:$0xf]
    %v331 = vld [vmem:[#allocation2 + $0x9c] sm:$0xff]
    %v332 = vld [vmem:[#allocation2 + $0xa4] sm:$0xf]
    %v333 = vld [vmem:[#allocation2 + $0xa8] sm:$0xff]
    %v334 = vld [vmem:[#allocation2 + $0xb0] sm:$0xf]
    %v335 = vld [vmem:[#allocation2 + $0xb4] sm:$0xff]
    %v336 = vld [vmem:[#allocation2 + $0xbc] sm:$0xf]
    %v337 = vld [vmem:[#allocation2 + $0xc0] sm:$0xff]
    %v338 = vld [vmem:[#allocation2 + $0xc8] sm:$0xf]
    %v339 = vld [vmem:[#allocation2 + $0xcc] sm:$0xff]
    %v340 = vld [vmem:[#allocation2 + $0xd4] sm:$0xf]
    %v341 = vld [vmem:[#allocation2 + $0xd8] sm:$0xff]
    %v342 = vld [vmem:[#allocation2 + $0xe0] sm:$0xf]
    %v343 = vld [vmem:[#allocation2 + $0xe4] sm:$0xff]
    %v344 = vld [vmem:[#allocation2 + $0xec] sm:$0xf]
    %v345 = vld [vmem:[#allocation2 + $0xf0] sm:$0xff]
    %v346 = vld [vmem:[#allocation2 + $0xf8] sm:$0xf]
    %v347 = vld [vmem:[#allocation2 + $0xfc] sm:$0xff]
    %v348 = vld [vmem:[#allocation2 + $0x104] sm:$0xf]
    %v349 = vld [vmem:[#allocation2 + $0x108] sm:$0xff]
    %v350 = vld [vmem:[#allocation2 + $0x110] sm:$0xf]
    %v351 = vld [vmem:[#allocation2 + $0x114] sm:$0xff]
    %v352 = vld [vmem:[#allocation2 + $0x11c] sm:$0xf]
    %v353 = vld [vmem:[#allocation2 + $0x120] sm:$0xff]
    %v354 = vld [vmem:[#allocation2 + $0x128] sm:$0xf]
    %v355 = vld [vmem:[#allocation2 + $0x12c] sm:$0xff]
    %v356 = vld [vmem:[#allocation2 + $0x134] sm:$0xf]
    %v357 = vld [vmem:[#allocation2 + $0x138] sm:$0xff]
    %v358 = vld [vmem:[#allocation2 + $0x140] sm:$0xf]
    %v359 = vld [vmem:[#allocation2 + $0x144] sm:$0xff]
    %v360 = vld [vmem:[#allocation2 + $0x14c] sm:$0xf]
    %v361 = vld [vmem:[#allocation2 + $0x150] sm:$0xff]
    %v362 = vld [vmem:[#allocation2 + $0x158] sm:$0xf]
    %v363 = vld [vmem:[#allocation2 + $0x15c] sm:$0xff]
    %v364 = vld [vmem:[#allocation2 + $0x164] sm:$0xf]
    %v365 = vld [vmem:[#allocation2 + $0x168] sm:$0xff]
    %v366 = vld [vmem:[#allocation2 + $0x170] sm:$0xf]
    %v367 = vld [vmem:[#allocation2 + $0x174] sm:$0xff]
    %v368 = vld [vmem:[#allocation2 + $0x17c] sm:$0xf]
    %v369 = vld [vmem:[#allocation2 + $0x180] sm:$0xff]
    %v370 = vld [vmem:[#allocation2 + $0x188] sm:$0xf]
    %v371 = vld [vmem:[#allocation2 + $0x18c] sm:$0xff]
    %v372 = vld [vmem:[#allocation2 + $0x194] sm:$0xf]
    %v373 = vld [vmem:[#allocation2 + $0x198] sm:$0xff]
    %v374 = vld [vmem:[#allocation2 + $0x1a0] sm:$0xf]
    %v375 = vld [vmem:[#allocation2 + $0x1a4] sm:$0xff]
    %v376 = vld [vmem:[#allocation2 + $0x1ac] sm:$0xf]
    %v377 = vld [vmem:[#allocation2 + $0x1b0] sm:$0xff]
    %v378 = vld [vmem:[#allocation2 + $0x1b8] sm:$0xf]
    %v379 = vld [vmem:[#allocation2 + $0x1bc] sm:$0xff]
    %v380 = vld [vmem:[#allocation2 + $0x1c4] sm:$0xf]
    %v381 = vld [vmem:[#allocation2 + $0x1c8] sm:$0xff]
    %v382 = vld [vmem:[#allocation2 + $0x1d0] sm:$0xf]
    %v383 = vld [vmem:[#allocation2 + $0x1d4] sm:$0xff]
    %v384 = vld [vmem:[#allocation2 + $0x1dc] sm:$0xf]
    %v385 = vld [vmem:[#allocation2 + $0x1e0] sm:$0xff]
    %v386 = vld [vmem:[#allocation2 + $0x1e8] sm:$0xf]
    %v387 = vld [vmem:[#allocation2 + $0x1ec] sm:$0xff]
    %v388 = vld [vmem:[#allocation2 + $0x1f4] sm:$0xf]
    %v389 = vld [vmem:[#allocation2 + $0x1f8] sm:$0xff]
    %v390 = vld [vmem:[#allocation2 + $0x200] sm:$0xf]
    %v391 = vld [vmem:[#allocation2 + $0x204] sm:$0xff]
    %v392 = vld [vmem:[#allocation2 + $0x20c] sm:$0xf]
    %v393 = vld [vmem:[#allocation2 + $0x210] sm:$0xff]
    %v394 = vld [vmem:[#allocation2 + $0x218] sm:$0xf]
    %v395 = vld [vmem:[#allocation2 + $0x21c] sm:$0xff]
    %v396 = vld [vmem:[#allocation2 + $0x224] sm:$0xf]
    %v397 = vld [vmem:[#allocation2 + $0x228] sm:$0xff]
    %v398 = vld [vmem:[#allocation2 + $0x230] sm:$0xf]
    %v399 = vld [vmem:[#allocation2 + $0x234] sm:$0xff]
    %v400 = vld [vmem:[#allocation2 + $0x23c] sm:$0xf]
    %v401 = vld [vmem:[#allocation2 + $0x240] sm:$0xff]
    %v402 = vld [vmem:[#allocation2 + $0x248] sm:$0xf]
    %v403 = vld [vmem:[#allocation2 + $0x24c] sm:$0xff]
    %v404 = vld [vmem:[#allocation2 + $0x254] sm:$0xf]
    %v405 = vld [vmem:[#allocation2 + $0x258] sm:$0xff]
    %v406 = vld [vmem:[#allocation2 + $0x260] sm:$0xf]
    %v407 = vld [vmem:[#allocation2 + $0x264] sm:$0xff]
    %v408 = vld [vmem:[#allocation2 + $0x26c] sm:$0xf]
    %v409 = vld [vmem:[#allocation2 + $0x270] sm:$0xff]
    %v410 = vld [vmem:[#allocation2 + $0x278] sm:$0xf]
    %v411 = vld [vmem:[#allocation2 + $0x27c] sm:$0xff]
    %v412 = vld [vmem:[#allocation2 + $0x284] sm:$0xf]
    %v413 = vld [vmem:[#allocation2 + $0x288] sm:$0xff]
    %v414 = vld [vmem:[#allocation2 + $0x290] sm:$0xf]
    %v415 = vld [vmem:[#allocation2 + $0x294] sm:$0xff]
    %v416 = vld [vmem:[#allocation2 + $0x29c] sm:$0xf]
    %v417 = vld [vmem:[#allocation2 + $0x2a0] sm:$0xff]
    %v418 = vld [vmem:[#allocation2 + $0x2a8] sm:$0xf]
    %v419 = vld [vmem:[#allocation2 + $0x2ac] sm:$0xff]
    %v420 = vld [vmem:[#allocation2 + $0x2b4] sm:$0xf]
    %v421 = vld [vmem:[#allocation2 + $0x2b8] sm:$0xff]
    %v422 = vld [vmem:[#allocation2 + $0x2c0] sm:$0xf]
    %v423 = vld [vmem:[#allocation2 + $0x2c4] sm:$0xff]
    %v424 = vld [vmem:[#allocation2 + $0x2cc] sm:$0xf]
    %v425 = vld [vmem:[#allocation2 + $0x2d0] sm:$0xff]
    %v426 = vld [vmem:[#allocation2 + $0x2d8] sm:$0xf]
    %v427 = vld [vmem:[#allocation2 + $0x2dc] sm:$0xff]
    %v428 = vld [vmem:[#allocation2 + $0x2e4] sm:$0xf]
    %v429 = vld [vmem:[#allocation2 + $0x2e8] sm:$0xff]
    %v430 = vld [vmem:[#allocation2 + $0x2f0] sm:$0xf]
    %v431 = vld [vmem:[#allocation2 + $0x2f4] sm:$0xff]
    %v432 = vld [vmem:[#allocation2 + $0x2fc] sm:$0xf]
    %v561 = vunpack.c.l.b16 %v305
    %v562 = vunpack.c.h.b16 %v305
    %v563 = vunpack.c.l.b16 %v306
    %v564 = vunpack.c.l.b16 %v307
    %v565 = vunpack.c.h.b16 %v307
    %v566 = vunpack.c.l.b16 %v308
    %v567 = vunpack.c.l.b16 %v309
    %v568 = vunpack.c.h.b16 %v309
    %v569 = vunpack.c.l.b16 %v310
    %v570 = vunpack.c.l.b16 %v311
    %v571 = vunpack.c.h.b16 %v311
    %v572 = vunpack.c.l.b16 %v312
    %v573 = vunpack.c.l.b16 %v313
    %v574 = vunpack.c.h.b16 %v313
    %v575 = vunpack.c.l.b16 %v314
    %v576 = vunpack.c.l.b16 %v315
    %v577 = vunpack.c.h.b16 %v315
    %v578 = vunpack.c.l.b16 %v316
    %v579 = vunpack.c.l.b16 %v317
    %v580 = vunpack.c.h.b16 %v317
    %v581 = vunpack.c.l.b16 %v318
    %v582 = vunpack.c.l.b16 %v319
    %v583 = vunpack.c.h.b16 %v319
    %v584 = vunpack.c.l.b16 %v320
    %v585 = vunpack.c.l.b16 %v321
    %v586 = vunpack.c.h.b16 %v321
    %v587 = vunpack.c.l.b16 %v322
    %v588 = vunpack.c.l.b16 %v323
    %v589 = vunpack.c.h.b16 %v323
    %v590 = vunpack.c.l.b16 %v324
    %v591 = vunpack.c.l.b16 %v325
    %v592 = vunpack.c.h.b16 %v325
    %v593 = vunpack.c.l.b16 %v326
    %v594 = vunpack.c.l.b16 %v327
    %v595 = vunpack.c.h.b16 %v327
    %v596 = vunpack.c.l.b16 %v328
    %v597 = vunpack.c.l.b16 %v329
    %v598 = vunpack.c.h.b16 %v329
    %v599 = vunpack.c.l.b16 %v330
    %v600 = vunpack.c.l.b16 %v331
    %v601 = vunpack.c.h.b16 %v331
    %v602 = vunpack.c.l.b16 %v332
    %v603 = vunpack.c.l.b16 %v333
    %v604 = vunpack.c.h.b16 %v333
    %v605 = vunpack.c.l.b16 %v334
    %v606 = vunpack.c.l.b16 %v335
    %v607 = vunpack.c.h.b16 %v335
    %v608 = vunpack.c.l.b16 %v336
    %v609 = vunpack.c.l.b16 %v337
    %v610 = vunpack.c.h.b16 %v337
    %v611 = vunpack.c.l.b16 %v338
    %v612 = vunpack.c.l.b16 %v339
    %v613 = vunpack.c.h.b16 %v339
    %v614 = vunpack.c.l.b16 %v340
    %v615 = vunpack.c.l.b16 %v341
    %v616 = vunpack.c.h.b16 %v341
    %v617 = vunpack.c.l.b16 %v342
    %v618 = vunpack.c.l.b16 %v343
    %v619 = vunpack.c.h.b16 %v343
    %v620 = vunpack.c.l.b16 %v344
    %v621 = vunpack.c.l.b16 %v345
    %v622 = vunpack.c.h.b16 %v345
    %v623 = vunpack.c.l.b16 %v346
    %v624 = vunpack.c.l.b16 %v347
    %v625 = vunpack.c.h.b16 %v347
    %v626 = vunpack.c.l.b16 %v348
    %v627 = vunpack.c.l.b16 %v349
    %v628 = vunpack.c.h.b16 %v349
    %v629 = vunpack.c.l.b16 %v350
    %v630 = vunpack.c.l.b16 %v351
    %v631 = vunpack.c.h.b16 %v351
    %v632 = vunpack.c.l.b16 %v352
    %v633 = vunpack.c.l.b16 %v353
    %v634 = vunpack.c.h.b16 %v353
    %v635 = vunpack.c.l.b16 %v354
    %v636 = vunpack.c.l.b16 %v355
    %v637 = vunpack.c.h.b16 %v355
    %v638 = vunpack.c.l.b16 %v356
    %v639 = vunpack.c.l.b16 %v357
    %v640 = vunpack.c.h.b16 %v357
    %v641 = vunpack.c.l.b16 %v358
    %v642 = vunpack.c.l.b16 %v359
    %v643 = vunpack.c.h.b16 %v359
    %v644 = vunpack.c.l.b16 %v360
    %v645 = vunpack.c.l.b16 %v361
    %v646 = vunpack.c.h.b16 %v361
    %v647 = vunpack.c.l.b16 %v362
    %v648 = vunpack.c.l.b16 %v363
    %v649 = vunpack.c.h.b16 %v363
    %v650 = vunpack.c.l.b16 %v364
    %v651 = vunpack.c.l.b16 %v365
    %v652 = vunpack.c.h.b16 %v365
    %v653 = vunpack.c.l.b16 %v366
    %v654 = vunpack.c.l.b16 %v367
    %v655 = vunpack.c.h.b16 %v367
    %v656 = vunpack.c.l.b16 %v368
    %v657 = vunpack.c.l.b16 %v369
    %v658 = vunpack.c.h.b16 %v369
    %v659 = vunpack.c.l.b16 %v370
    %v660 = vunpack.c.l.b16 %v371
    %v661 = vunpack.c.h.b16 %v371
    %v662 = vunpack.c.l.b16 %v372
    %v663 = vunpack.c.l.b16 %v373
    %v664 = vunpack.c.h.b16 %v373
    %v665 = vunpack.c.l.b16 %v374
    %v666 = vunpack.c.l.b16 %v375
    %v667 = vunpack.c.h.b16 %v375
    %v668 = vunpack.c.l.b16 %v376
    %v669 = vunpack.c.l.b16 %v377
    %v670 = vunpack.c.h.b16 %v377
    %v671 = vunpack.c.l.b16 %v378
    %v672 = vunpack.c.l.b16 %v379
    %v673 = vunpack.c.h.b16 %v379
    %v674 = vunpack.c.l.b16 %v380
    %v675 = vunpack.c.l.b16 %v381
    %v676 = vunpack.c.h.b16 %v381
    %v677 = vunpack.c.l.b16 %v382
    %v678 = vunpack.c.l.b16 %v383
    %v679 = vunpack.c.h.b16 %v383
    %v680 = vunpack.c.l.b16 %v384
    %v681 = vunpack.c.l.b16 %v385
    %v682 = vunpack.c.h.b16 %v385
    %v683 = vunpack.c.l.b16 %v386
    %v684 = vunpack.c.l.b16 %v387
    %v685 = vunpack.c.h.b16 %v387
    %v686 = vunpack.c.l.b16 %v388
    %v687 = vunpack.c.l.b16 %v389
    %v688 = vunpack.c.h.b16 %v389
    %v689 = vunpack.c.l.b16 %v390
    %v690 = vunpack.c.l.b16 %v391
    %v691 = vunpack.c.h.b16 %v391
    %v692 = vunpack.c.l.b16 %v392
    %v693 = vunpack.c.l.b16 %v393
    %v694 = vunpack.c.h.b16 %v393
    %v695 = vunpack.c.l.b16 %v394
    %v696 = vunpack.c.l.b16 %v395
    %v697 = vunpack.c.h.b16 %v395
    %v698 = vunpack.c.l.b16 %v396
    %v699 = vunpack.c.l.b16 %v397
    %v700 = vunpack.c.h.b16 %v397
    %v701 = vunpack.c.l.b16 %v398
    %v702 = vunpack.c.l.b16 %v399
    %v703 = vunpack.c.h.b16 %v399
    %v704 = vunpack.c.l.b16 %v400
    %v705 = vunpack.c.l.b16 %v401
    %v706 = vunpack.c.h.b16 %v401
    %v707 = vunpack.c.l.b16 %v402
    %v708 = vunpack.c.l.b16 %v403
    %v709 = vunpack.c.h.b16 %v403
    %v710 = vunpack.c.l.b16 %v404
    %v711 = vunpack.c.l.b16 %v405
    %v712 = vunpack.c.h.b16 %v405
    %v713 = vunpack.c.l.b16 %v406
    %v714 = vunpack.c.l.b16 %v407
    %v715 = vunpack.c.h.b16 %v407
    %v716 = vunpack.c.l.b16 %v408
    %v717 = vunpack.c.l.b16 %v409
    %v718 = vunpack.c.h.b16 %v409
    %v719 = vunpack.c.l.b16 %v410
    %v720 = vunpack.c.l.b16 %v411
    %v721 = vunpack.c.h.b16 %v411
    %v722 = vunpack.c.l.b16 %v412
    %v723 = vunpack.c.l.b16 %v413
    %v724 = vunpack.c.h.b16 %v413
    %v725 = vunpack.c.l.b16 %v414
    %v726 = vunpack.c.l.b16 %v415
    %v727 = vunpack.c.h.b16 %v415
    %v728 = vunpack.c.l.b16 %v416
    %v729 = vunpack.c.l.b16 %v417
    %v730 = vunpack.c.h.b16 %v417
    %v731 = vunpack.c.l.b16 %v418
    %v732 = vunpack.c.l.b16 %v419
    %v733 = vunpack.c.h.b16 %v419
    %v734 = vunpack.c.l.b16 %v420
    %v735 = vunpack.c.l.b16 %v421
    %v736 = vunpack.c.h.b16 %v421
    %v737 = vunpack.c.l.b16 %v422
    %v738 = vunpack.c.l.b16 %v423
    %v739 = vunpack.c.h.b16 %v423
    %v740 = vunpack.c.l.b16 %v424
    %v741 = vunpack.c.l.b16 %v425
    %v742 = vunpack.c.h.b16 %v425
    %v743 = vunpack.c.l.b16 %v426
    %v744 = vunpack.c.l.b16 %v427
    %v745 = vunpack.c.h.b16 %v427
    %v746 = vunpack.c.l.b16 %v428
    %v747 = vunpack.c.l.b16 %v429
    %v748 = vunpack.c.h.b16 %v429
    %v749 = vunpack.c.l.b16 %v430
    %v750 = vunpack.c.l.b16 %v431
    %v751 = vunpack.c.h.b16 %v431
    %v752 = vunpack.c.l.b16 %v432
    %v753 = vpack.c.b16 %v564, %v561
    %v754 = vpack.c.b16 %v565, %v562
    %v755 = vpack.c.b16 %v566, %v563
    %v756 = vpack.c.b16 %v570, %v567
    %v757 = vpack.c.b16 %v571, %v568
    %v758 = vpack.c.b16 %v572, %v569
    %v759 = vpack.c.b16 %v576, %v573
    %v760 = vpack.c.b16 %v577, %v574
    %v761 = vpack.c.b16 %v578, %v575
    %v762 = vpack.c.b16 %v582, %v579
    %v763 = vpack.c.b16 %v583, %v580
    %v764 = vpack.c.b16 %v584, %v581
    %v765 = vpack.c.b16 %v588, %v585
    %v766 = vpack.c.b16 %v589, %v586
    %v767 = vpack.c.b16 %v590, %v587
    %v768 = vpack.c.b16 %v594, %v591
    %v769 = vpack.c.b16 %v595, %v592
    %v770 = vpack.c.b16 %v596, %v593
    %v771 = vpack.c.b16 %v600, %v597
    %v772 = vpack.c.b16 %v601, %v598
    %v773 = vpack.c.b16 %v602, %v599
    %v774 = vpack.c.b16 %v606, %v603
    %v775 = vpack.c.b16 %v607, %v604
    %v776 = vpack.c.b16 %v608, %v605
    %v777 = vpack.c.b16 %v612, %v609
    %v778 = vpack.c.b16 %v613, %v610
    %v779 = vpack.c.b16 %v614, %v611
    %v780 = vpack.c.b16 %v618, %v615
    %v781 = vpack.c.b16 %v619, %v616
    %v782 = vpack.c.b16 %v620, %v617
    %v783 = vpack.c.b16 %v624, %v621
    %v784 = vpack.c.b16 %v625, %v622
    %v785 = vpack.c.b16 %v626, %v623
    %v786 = vpack.c.b16 %v630, %v627
    %v787 = vpack.c.b16 %v631, %v628
    %v788 = vpack.c.b16 %v632, %v629
    %v789 = vpack.c.b16 %v636, %v633
    %v790 = vpack.c.b16 %v637, %v634
    %v791 = vpack.c.b16 %v638, %v635
    %v792 = vpack.c.b16 %v642, %v639
    %v793 = vpack.c.b16 %v643, %v640
    %v794 = vpack.c.b16 %v644, %v641
    %v795 = vpack.c.b16 %v648, %v645
    %v796 = vpack.c.b16 %v649, %v646
    %v797 = vpack.c.b16 %v650, %v647
    %v798 = vpack.c.b16 %v654, %v651
    %v799 = vpack.c.b16 %v655, %v652
    %v800 = vpack.c.b16 %v656, %v653
    %v801 = vpack.c.b16 %v660, %v657
    %v802 = vpack.c.b16 %v661, %v658
    %v803 = vpack.c.b16 %v662, %v659
    %v804 = vpack.c.b16 %v666, %v663
    %v805 = vpack.c.b16 %v667, %v664
    %v806 = vpack.c.b16 %v668, %v665
    %v807 = vpack.c.b16 %v672, %v669
    %v808 = vpack.c.b16 %v673, %v670
    %v809 = vpack.c.b16 %v674, %v671
    %v810 = vpack.c.b16 %v678, %v675
    %v811 = vpack.c.b16 %v679, %v676
    %v812 = vpack.c.b16 %v680, %v677
    %v813 = vpack.c.b16 %v684, %v681
    %v814 = vpack.c.b16 %v685, %v682
    %v815 = vpack.c.b16 %v686, %v683
    %v816 = vpack.c.b16 %v690, %v687
    %v817 = vpack.c.b16 %v691, %v688
    %v818 = vpack.c.b16 %v692, %v689
    %v819 = vpack.c.b16 %v696, %v693
    %v820 = vpack.c.b16 %v697, %v694
    %v821 = vpack.c.b16 %v698, %v695
    %v822 = vpack.c.b16 %v702, %v699
    %v823 = vpack.c.b16 %v703, %v700
    %v824 = vpack.c.b16 %v704, %v701
    %v825 = vpack.c.b16 %v708, %v705
    %v826 = vpack.c.b16 %v709, %v706
    %v827 = vpack.c.b16 %v710, %v707
    %v828 = vpack.c.b16 %v714, %v711
    %v829 = vpack.c.b16 %v715, %v712
    %v830 = vpack.c.b16 %v716, %v713
    %v831 = vpack.c.b16 %v720, %v717
    %v832 = vpack.c.b16 %v721, %v718
    %v833 = vpack.c.b16 %v722, %v719
    %v834 = vpack.c.b16 %v726, %v723
    %v835 = vpack.c.b16 %v727, %v724
    %v836 = vpack.c.b16 %v728, %v725
    %v837 = vpack.c.b16 %v732, %v729
    %v838 = vpack.c.b16 %v733, %v730
    %v839 = vpack.c.b16 %v734, %v731
    %v840 = vpack.c.b16 %v738, %v735
    %v841 = vpack.c.b16 %v739, %v736
    %v842 = vpack.c.b16 %v740, %v737
    %v843 = vpack.c.b16 %v744, %v741
    %v844 = vpack.c.b16 %v745, %v742
    %v845 = vpack.c.b16 %v746, %v743
    %v846 = vpack.c.b16 %v750, %v747
    %v847 = vpack.c.b16 %v751, %v748
    %v848 = vpack.c.b16 %v752, %v749
    %945 = vmatprep.subr.bf16.mxu0 %v754
    %946 = vmatpush1.bf16.msra.mxu0 %v753
    %947 = vmatprep.subr.bf16.mxu0 %v757
    %948 = vmatpush1.bf16.msra.mxu0 %v756
    %949 = vmatprep.subr.bf16.mxu0 %v760
    %950 = vmatpush1.bf16.msra.mxu0 %v759
    %951 = vmatprep.subr.bf16.mxu0 %v763
    %952 = vmatpush1.bf16.msra.mxu0 %v762
    %953 = vmatprep.subr.bf16.mxu0 %v766
    %954 = vmatpush1.bf16.msra.mxu0 %v765
    %955 = vmatprep.subr.bf16.mxu0 %v769
    %956 = vmatpush1.bf16.msra.mxu0 %v768
    %957 = vmatprep.subr.bf16.mxu0 %v772
    %958 = vmatpush1.bf16.msra.mxu0 %v771
    %959 = vmatprep.subr.bf16.mxu0 %v775
    %960 = vmatpush1.bf16.msra.mxu0 %v774
    %961 = vmatprep.subr.bf16.mxu0 %v778
    %962 = vmatpush1.bf16.msra.mxu0 %v777
    %963 = vmatprep.subr.bf16.mxu0 %v781
    %964 = vmatpush1.bf16.msra.mxu0 %v780
    %965 = vmatprep.subr.bf16.mxu0 %v784
    %966 = vmatpush1.bf16.msra.mxu0 %v783
    %967 = vmatprep.subr.bf16.mxu0 %v787
    %968 = vmatpush1.bf16.msra.mxu0 %v786
    %969 = vmatprep.subr.bf16.mxu0 %v790
    %970 = vmatpush1.bf16.msra.mxu0 %v789
    %971 = vmatprep.subr.bf16.mxu0 %v793
    %972 = vmatpush1.bf16.msra.mxu0 %v792
    %973 = vmatprep.subr.bf16.mxu0 %v796
    %974 = vmatpush1.bf16.msra.mxu0 %v795
    %975 = vmatprep.subr.bf16.mxu0 %v799
    %976 = vmatpush1.bf16.msra.mxu0 %v798
    %977 = vmatprep.mubr.bf16.mxu0 %v298
    %978 = vmatmul.mubr.bf16.gmra.mrb[0].mxu0 %v297
    %v979 = vpop.f32.mrb[0].mxu0
    %v980 = vadd.f32 0.0, %v979
    %v981 = vpop.f32.mrb[0].mxu0
    %v982 = vadd.f32 0.0, %v981
    %v983 = vpop.f32.mrb[0].mxu0
    %v984 = vpop.f32.mrb[0].mxu0
    %985 = vdwg.mxu0
    %986 = vmatprep.subr.bf16.mxu0 %v802
    %987 = vmatpush1.bf16.msra.mxu0 %v801
    %988 = vmatprep.subr.bf16.mxu0 %v805
    %989 = vmatpush1.bf16.msra.mxu0 %v804
    %990 = vmatprep.subr.bf16.mxu0 %v808
    %991 = vmatpush1.bf16.msra.mxu0 %v807
    %992 = vmatprep.subr.bf16.mxu0 %v811
    %993 = vmatpush1.bf16.msra.mxu0 %v810
    %994 = vmatprep.subr.bf16.mxu0 %v814
    %995 = vmatpush1.bf16.msra.mxu0 %v813
    %996 = vmatprep.subr.bf16.mxu0 %v817
    %997 = vmatpush1.bf16.msra.mxu0 %v816
    %998 = vmatprep.subr.bf16.mxu0 %v820
    %999 = vmatpush1.bf16.msra.mxu0 %v819
    %1000 = vmatprep.subr.bf16.mxu0 %v823
    %1001 = vmatpush1.bf16.msra.mxu0 %v822
    %1002 = vmatprep.subr.bf16.mxu0 %v826
    %1003 = vmatpush1.bf16.msra.mxu0 %v825
    %1004 = vmatprep.subr.bf16.mxu0 %v829
    %1005 = vmatpush1.bf16.msra.mxu0 %v828
    %1006 = vmatprep.subr.bf16.mxu0 %v832
    %1007 = vmatpush1.bf16.msra.mxu0 %v831
    %1008 = vmatprep.subr.bf16.mxu0 %v835
    %1009 = vmatpush1.bf16.msra.mxu0 %v834
    %1010 = vmatprep.subr.bf16.mxu0 %v838
    %1011 = vmatpush1.bf16.msra.mxu0 %v837
    %1012 = vmatprep.subr.bf16.mxu0 %v841
    %1013 = vmatpush1.bf16.msra.mxu0 %v840
    %1014 = vmatprep.subr.bf16.mxu0 %v844
    %1015 = vmatpush1.bf16.msra.mxu0 %v843
    %1016 = vmatprep.subr.bf16.mxu0 %v847
    %1017 = vmatpush1.bf16.msra.mxu0 %v846
    %1018 = vmatprep.mubr.bf16.mxu0 %v300
    %1019 = vmatmul.mubr.bf16.gmra.mrb[0].mxu0 %v299
    %v1020 = vpop.f32.mrb[0].mxu0
    %v1021 = vadd.f32 %v980, %v1020
    %v1022 = vpop.f32.mrb[0].mxu0
    %v1023 = vadd.f32 %v982, %v1022
    %v1024 = vpop.f32.mrb[0].mxu0
    %v1025 = vpop.f32.mrb[0].mxu0
    %1026 = vdwg.mxu0
    %1027 = vmatprep.subr.bf16.mxu0 0
    %1028 = vmatpush1.bf16.msra.mxu0 %v755
    %1029 = vmatprep.subr.bf16.mxu0 0
    %1030 = vmatpush1.bf16.msra.mxu0 %v758
    %1031 = vmatprep.subr.bf16.mxu0 0
    %1032 = vmatpush1.bf16.msra.mxu0 %v761
    %1033 = vmatprep.subr.bf16.mxu0 0
    %1034 = vmatpush1.bf16.msra.mxu0 %v764
    %1035 = vmatprep.subr.bf16.mxu0 0
    %1036 = vmatpush1.bf16.msra.mxu0 %v767
    %1037 = vmatprep.subr.bf16.mxu0 0
    %1038 = vmatpush1.bf16.msra.mxu0 %v770
    %1039 = vmatprep.subr.bf16.mxu0 0
    %1040 = vmatpush1.bf16.msra.mxu0 %v773
    %1041 = vmatprep.subr.bf16.mxu0 0
    %1042 = vmatpush1.bf16.msra.mxu0 %v776
    %1043 = vmatprep.subr.bf16.mxu0 0
    %1044 = vmatpush1.bf16.msra.mxu0 %v779
    %1045 = vmatprep.subr.bf16.mxu0 0
    %1046 = vmatpush1.bf16.msra.mxu0 %v782
    %1047 = vmatprep.subr.bf16.mxu0 0
    %1048 = vmatpush1.bf16.msra.mxu0 %v785
    %1049 = vmatprep.subr.bf16.mxu0 0
    %1050 = vmatpush1.bf16.msra.mxu0 %v788
    %1051 = vmatprep.subr.bf16.mxu0 0
    %1052 = vmatpush1.bf16.msra.mxu0 %v791
    %1053 = vmatprep.subr.bf16.mxu0 0
    %1054 = vmatpush1.bf16.msra.mxu0 %v794
    %1055 = vmatprep.subr.bf16.mxu0 0
    %1056 = vmatpush1.bf16.msra.mxu0 %v797
    %1057 = vmatprep.subr.bf16.mxu0 0
    %1058 = vmatpush1.bf16.msra.mxu0 %v800
    %1059 = vmatprep.mubr.bf16.mxu0 %v298
    %1060 = vmatmul.mubr.bf16.gmra.mrb[0].mxu0 %v297
    %v1061 = vpop.f32.mrb[0].mxu0
    %v1062 = vadd.f32 0.0, %v1061
    %v1063 = vpop.f32.mrb[0].mxu0
    %v1064 = vpop.f32.mrb[0].mxu0
    %v1065 = vpop.f32.mrb[0].mxu0
    %1066 = vdwg.mxu0
    %1067 = vmatprep.subr.bf16.mxu0 0
    %1068 = vmatpush1.bf16.msra.mxu0 %v803
    %1069 = vmatprep.subr.bf16.mxu0 0
    %1070 = vmatpush1.bf16.msra.mxu0 %v806
    %1071 = vmatprep.subr.bf16.mxu0 0
    %1072 = vmatpush1.bf16.msra.mxu0 %v809
    %1073 = vmatprep.subr.bf16.mxu0 0
    %1074 = vmatpush1.bf16.msra.mxu0 %v812
    %1075 = vmatprep.subr.bf16.mxu0 0
    %1076 = vmatpush1.bf16.msra.mxu0 %v815
    %1077 = vmatprep.subr.bf16.mxu0 0
    %1078 = vmatpush1.bf16.msra.mxu0 %v818
    %1079 = vmatprep.subr.bf16.mxu0 0
    %1080 = vmatpush1.bf16.msra.mxu0 %v821
    %1081 = vmatprep.subr.bf16.mxu0 0
    %1082 = vmatpush1.bf16.msra.mxu0 %v824
    %1083 = vmatprep.subr.bf16.mxu0 0
    %1084 = vmatpush1.bf16.msra.mxu0 %v827
    %1085 = vmatprep.subr.bf16.mxu0 0
    %1086 = vmatpush1.bf16.msra.mxu0 %v830
    %1087 = vmatprep.subr.bf16.mxu0 0
    %1088 = vmatpush1.bf16.msra.mxu0 %v833
    %1089 = vmatprep.subr.bf16.mxu0 0
    %1090 = vmatpush1.bf16.msra.mxu0 %v836
    %1091 = vmatprep.subr.bf16.mxu0 0
    %1092 = vmatpush1.bf16.msra.mxu0 %v839
    %1093 = vmatprep.subr.bf16.mxu0 0
    %1094 = vmatpush1.bf16.msra.mxu0 %v842
    %1095 = vmatprep.subr.bf16.mxu0 0
    %1096 = vmatpush1.bf16.msra.mxu0 %v845
    %1097 = vmatprep.subr.bf16.mxu0 0
    %1098 = vmatpush1.bf16.msra.mxu0 %v848
    %1099 = vmatprep.mubr.bf16.mxu0 %v300
    %1100 = vmatmul.mubr.bf16.gmra.mrb[0].mxu0 %v299
    %v1101 = vpop.f32.mrb[0].mxu0
    %v1102 = vadd.f32 %v1062, %v1101
    %v1103 = vpop.f32.mrb[0].mxu0
    %v1104 = vpop.f32.mrb[0].mxu0
    %v1105 = vpop.f32.mrb[0].mxu0
    %1106 = vdwg.mxu0
    %v1107 = vpack.c.bf16 %v1021, %v1021
    %v1108 = vpack.c.bf16 %v1023, %v1023
    %v1109 = vpack.c.bf16 %v1102, %v1102
    %v1110 = vmax.bf16 %v1107, 0
    %v1111 = vmax.bf16 %v1108, 0
    %v1112 = vmax.bf16 %v1109, 0
    %v1113 = vld [vmem:[#allocation4] sm:$0xff]
    %v1114 = vld [vmem:[#allocation4 + $0x8] sm:$0xf]
    %v1115 = vld [vmem:[#allocation4 + $0xc] sm:$0xff]
    %v1116 = vld [vmem:[#allocation4 + $0x14] sm:$0xf]
    %v1117 = vld [vmem:[#allocation4 + $0x18] sm:$0xff]
    %v1118 = vld [vmem:[#allocation4 + $0x20] sm:$0xf]
    %v1119 = vld [vmem:[#allocation4 + $0x24] sm:$0xff]
    %v1120 = vld [vmem:[#allocation4 + $0x2c] sm:$0xf]
    %v1121 = vld [vmem:[#allocation4 + $0x30] sm:$0xff]
    %v1122 = vld [vmem:[#allocation4 + $0x38] sm:$0xf]
    %v1123 = vld [vmem:[#allocation4 + $0x3c] sm:$0xff]
    %v1124 = vld [vmem:[#allocation4 + $0x44] sm:$0xf]
    %v1125 = vld [vmem:[#allocation4 + $0x48] sm:$0xff]
    %v1126 = vld [vmem:[#allocation4 + $0x50] sm:$0xf]
    %v1127 = vld [vmem:[#allocation4 + $0x54] sm:$0xff]
    %v1128 = vld [vmem:[#allocation4 + $0x5c] sm:$0xf]
    %v1129 = vld [vmem:[#allocation4 + $0x60] sm:$0xff]
    %v1130 = vld [vmem:[#allocation4 + $0x68] sm:$0xf]
    %v1131 = vld [vmem:[#allocation4 + $0x6c] sm:$0xff]
    %v1132 = vld [vmem:[#allocation4 + $0x74] sm:$0xf]
    %v1133 = vld [vmem:[#allocation4 + $0x78] sm:$0xff]
    %v1134 = vld [vmem:[#allocation4 + $0x80] sm:$0xf]
    %v1135 = vld [vmem:[#allocation4 + $0x84] sm:$0xff]
    %v1136 = vld [vmem:[#allocation4 + $0x8c] sm:$0xf]
    %v1137 = vld [vmem:[#allocation4 + $0x90] sm:$0xff]
    %v1138 = vld [vmem:[#allocation4 + $0x98] sm:$0xf]
    %v1139 = vld [vmem:[#allocation4 + $0x9c] sm:$0xff]
    %v1140 = vld [vmem:[#allocation4 + $0xa4] sm:$0xf]
    %v1141 = vld [vmem:[#allocation4 + $0xa8] sm:$0xff]
    %v1142 = vld [vmem:[#allocation4 + $0xb0] sm:$0xf]
    %v1143 = vld [vmem:[#allocation4 + $0xb4] sm:$0xff]
    %v1144 = vld [vmem:[#allocation4 + $0xbc] sm:$0xf]
    %v1145 = vld [vmem:[#allocation4 + $0xc0] sm:$0xff]
    %v1146 = vld [vmem:[#allocation4 + $0xc8] sm:$0xf]
    %v1147 = vld [vmem:[#allocation4 + $0xcc] sm:$0xff]
    %v1148 = vld [vmem:[#allocation4 + $0xd4] sm:$0xf]
    %v1149 = vld [vmem:[#allocation4 + $0xd8] sm:$0xff]
    %v1150 = vld [vmem:[#allocation4 + $0xe0] sm:$0xf]
    %v1151 = vld [vmem:[#allocation4 + $0xe4] sm:$0xff]
    %v1152 = vld [vmem:[#allocation4 + $0xec] sm:$0xf]
    %v1153 = vld [vmem:[#allocation4 + $0xf0] sm:$0xff]
    %v1154 = vld [vmem:[#allocation4 + $0xf8] sm:$0xf]
    %v1155 = vld [vmem:[#allocation4 + $0xfc] sm:$0xff]
    %v1156 = vld [vmem:[#allocation4 + $0x104] sm:$0xf]
    %v1157 = vld [vmem:[#allocation4 + $0x108] sm:$0xff]
    %v1158 = vld [vmem:[#allocation4 + $0x110] sm:$0xf]
    %v1159 = vld [vmem:[#allocation4 + $0x114] sm:$0xff]
    %v1160 = vld [vmem:[#allocation4 + $0x11c] sm:$0xf]
    %v1161 = vld [vmem:[#allocation4 + $0x120] sm:$0xff]
    %v1162 = vld [vmem:[#allocation4 + $0x128] sm:$0xf]
    %v1163 = vld [vmem:[#allocation4 + $0x12c] sm:$0xff]
    %v1164 = vld [vmem:[#allocation4 + $0x134] sm:$0xf]
    %v1165 = vld [vmem:[#allocation4 + $0x138] sm:$0xff]
    %v1166 = vld [vmem:[#allocation4 + $0x140] sm:$0xf]
    %v1167 = vld [vmem:[#allocation4 + $0x144] sm:$0xff]
    %v1168 = vld [vmem:[#allocation4 + $0x14c] sm:$0xf]
    %v1169 = vld [vmem:[#allocation4 + $0x150] sm:$0xff]
    %v1170 = vld [vmem:[#allocation4 + $0x158] sm:$0xf]
    %v1171 = vld [vmem:[#allocation4 + $0x15c] sm:$0xff]
    %v1172 = vld [vmem:[#allocation4 + $0x164] sm:$0xf]
    %v1173 = vld [vmem:[#allocation4 + $0x168] sm:$0xff]
    %v1174 = vld [vmem:[#allocation4 + $0x170] sm:$0xf]
    %v1175 = vld [vmem:[#allocation4 + $0x174] sm:$0xff]
    %v1176 = vld [vmem:[#allocation4 + $0x17c] sm:$0xf]
    %v1177 = vld [vmem:[#allocation4 + $0x180] sm:$0xff]
    %v1178 = vld [vmem:[#allocation4 + $0x188] sm:$0xf]
    %v1179 = vld [vmem:[#allocation4 + $0x18c] sm:$0xff]
    %v1180 = vld [vmem:[#allocation4 + $0x194] sm:$0xf]
    %v1181 = vld [vmem:[#allocation4 + $0x198] sm:$0xff]
    %v1182 = vld [vmem:[#allocation4 + $0x1a0] sm:$0xf]
    %v1183 = vld [vmem:[#allocation4 + $0x1a4] sm:$0xff]
    %v1184 = vld [vmem:[#allocation4 + $0x1ac] sm:$0xf]
    %v1185 = vld [vmem:[#allocation4 + $0x1b0] sm:$0xff]
    %v1186 = vld [vmem:[#allocation4 + $0x1b8] sm:$0xf]
    %v1187 = vld [vmem:[#allocation4 + $0x1bc] sm:$0xff]
    %v1188 = vld [vmem:[#allocation4 + $0x1c4] sm:$0xf]
    %v1189 = vld [vmem:[#allocation4 + $0x1c8] sm:$0xff]
    %v1190 = vld [vmem:[#allocation4 + $0x1d0] sm:$0xf]
    %v1191 = vld [vmem:[#allocation4 + $0x1d4] sm:$0xff]
    %v1192 = vld [vmem:[#allocation4 + $0x1dc] sm:$0xf]
    %v1193 = vld [vmem:[#allocation4 + $0x1e0] sm:$0xff]
    %v1194 = vld [vmem:[#allocation4 + $0x1e8] sm:$0xf]
    %v1195 = vld [vmem:[#allocation4 + $0x1ec] sm:$0xff]
    %v1196 = vld [vmem:[#allocation4 + $0x1f4] sm:$0xf]
    %v1197 = vld [vmem:[#allocation4 + $0x1f8] sm:$0xff]
    %v1198 = vld [vmem:[#allocation4 + $0x200] sm:$0xf]
    %v1199 = vld [vmem:[#allocation4 + $0x204] sm:$0xff]
    %v1200 = vld [vmem:[#allocation4 + $0x20c] sm:$0xf]
    %v1201 = vld [vmem:[#allocation4 + $0x210] sm:$0xff]
    %v1202 = vld [vmem:[#allocation4 + $0x218] sm:$0xf]
    %v1203 = vld [vmem:[#allocation4 + $0x21c] sm:$0xff]
    %v1204 = vld [vmem:[#allocation4 + $0x224] sm:$0xf]
    %v1205 = vld [vmem:[#allocation4 + $0x228] sm:$0xff]
    %v1206 = vld [vmem:[#allocation4 + $0x230] sm:$0xf]
    %v1207 = vld [vmem:[#allocation4 + $0x234] sm:$0xff]
    %v1208 = vld [vmem:[#allocation4 + $0x23c] sm:$0xf]
    %v1209 = vld [vmem:[#allocation4 + $0x240] sm:$0xff]
    %v1210 = vld [vmem:[#allocation4 + $0x248] sm:$0xf]
    %v1211 = vld [vmem:[#allocation4 + $0x24c] sm:$0xff]
    %v1212 = vld [vmem:[#allocation4 + $0x254] sm:$0xf]
    %v1213 = vld [vmem:[#allocation4 + $0x258] sm:$0xff]
    %v1214 = vld [vmem:[#allocation4 + $0x260] sm:$0xf]
    %v1215 = vld [vmem:[#allocation4 + $0x264] sm:$0xff]
    %v1216 = vld [vmem:[#allocation4 + $0x26c] sm:$0xf]
    %v1217 = vld [vmem:[#allocation4 + $0x270] sm:$0xff]
    %v1218 = vld [vmem:[#allocation4 + $0x278] sm:$0xf]
    %v1219 = vld [vmem:[#allocation4 + $0x27c] sm:$0xff]
    %v1220 = vld [vmem:[#allocation4 + $0x284] sm:$0xf]
    %v1221 = vld [vmem:[#allocation4 + $0x288] sm:$0xff]
    %v1222 = vld [vmem:[#allocation4 + $0x290] sm:$0xf]
    %v1223 = vld [vmem:[#allocation4 + $0x294] sm:$0xff]
    %v1224 = vld [vmem:[#allocation4 + $0x29c] sm:$0xf]
    %v1225 = vld [vmem:[#allocation4 + $0x2a0] sm:$0xff]
    %v1226 = vld [vmem:[#allocation4 + $0x2a8] sm:$0xf]
    %v1227 = vld [vmem:[#allocation4 + $0x2ac] sm:$0xff]
    %v1228 = vld [vmem:[#allocation4 + $0x2b4] sm:$0xf]
    %v1229 = vld [vmem:[#allocation4 + $0x2b8] sm:$0xff]
    %v1230 = vld [vmem:[#allocation4 + $0x2c0] sm:$0xf]
    %v1231 = vld [vmem:[#allocation4 + $0x2c4] sm:$0xff]
    %v1232 = vld [vmem:[#allocation4 + $0x2cc] sm:$0xf]
    %v1233 = vld [vmem:[#allocation4 + $0x2d0] sm:$0xff]
    %v1234 = vld [vmem:[#allocation4 + $0x2d8] sm:$0xf]
    %v1235 = vld [vmem:[#allocation4 + $0x2dc] sm:$0xff]
    %v1236 = vld [vmem:[#allocation4 + $0x2e4] sm:$0xf]
    %v1237 = vld [vmem:[#allocation4 + $0x2e8] sm:$0xff]
    %v1238 = vld [vmem:[#allocation4 + $0x2f0] sm:$0xf]
    %v1239 = vld [vmem:[#allocation4 + $0x2f4] sm:$0xff]
    %v1240 = vld [vmem:[#allocation4 + $0x2fc] sm:$0xf]
    %v1369 = vunpack.c.l.b16 %v1113
    %v1370 = vunpack.c.h.b16 %v1113
    %v1371 = vunpack.c.l.b16 %v1114
    %v1372 = vunpack.c.l.b16 %v1115
    %v1373 = vunpack.c.h.b16 %v1115
    %v1374 = vunpack.c.l.b16 %v1116
    %v1375 = vunpack.c.l.b16 %v1117
    %v1376 = vunpack.c.h.b16 %v1117
    %v1377 = vunpack.c.l.b16 %v1118
    %v1378 = vunpack.c.l.b16 %v1119
    %v1379 = vunpack.c.h.b16 %v1119
    %v1380 = vunpack.c.l.b16 %v1120
    %v1381 = vunpack.c.l.b16 %v1121
    %v1382 = vunpack.c.h.b16 %v1121
    %v1383 = vunpack.c.l.b16 %v1122
    %v1384 = vunpack.c.l.b16 %v1123
    %v1385 = vunpack.c.h.b16 %v1123
    %v1386 = vunpack.c.l.b16 %v1124
    %v1387 = vunpack.c.l.b16 %v1125
    %v1388 = vunpack.c.h.b16 %v1125
    %v1389 = vunpack.c.l.b16 %v1126
    %v1390 = vunpack.c.l.b16 %v1127
    %v1391 = vunpack.c.h.b16 %v1127
    %v1392 = vunpack.c.l.b16 %v1128
    %v1393 = vunpack.c.l.b16 %v1129
    %v1394 = vunpack.c.h.b16 %v1129
    %v1395 = vunpack.c.l.b16 %v1130
    %v1396 = vunpack.c.l.b16 %v1131
    %v1397 = vunpack.c.h.b16 %v1131
    %v1398 = vunpack.c.l.b16 %v1132
    %v1399 = vunpack.c.l.b16 %v1133
    %v1400 = vunpack.c.h.b16 %v1133
    %v1401 = vunpack.c.l.b16 %v1134
    %v1402 = vunpack.c.l.b16 %v1135
    %v1403 = vunpack.c.h.b16 %v1135
    %v1404 = vunpack.c.l.b16 %v1136
    %v1405 = vunpack.c.l.b16 %v1137
    %v1406 = vunpack.c.h.b16 %v1137
    %v1407 = vunpack.c.l.b16 %v1138
    %v1408 = vunpack.c.l.b16 %v1139
    %v1409 = vunpack.c.h.b16 %v1139
    %v1410 = vunpack.c.l.b16 %v1140
    %v1411 = vunpack.c.l.b16 %v1141
    %v1412 = vunpack.c.h.b16 %v1141
    %v1413 = vunpack.c.l.b16 %v1142
    %v1414 = vunpack.c.l.b16 %v1143
    %v1415 = vunpack.c.h.b16 %v1143
    %v1416 = vunpack.c.l.b16 %v1144
    %v1417 = vunpack.c.l.b16 %v1145
    %v1418 = vunpack.c.h.b16 %v1145
    %v1419 = vunpack.c.l.b16 %v1146
    %v1420 = vunpack.c.l.b16 %v1147
    %v1421 = vunpack.c.h.b16 %v1147
    %v1422 = vunpack.c.l.b16 %v1148
    %v1423 = vunpack.c.l.b16 %v1149
    %v1424 = vunpack.c.h.b16 %v1149
    %v1425 = vunpack.c.l.b16 %v1150
    %v1426 = vunpack.c.l.b16 %v1151
    %v1427 = vunpack.c.h.b16 %v1151
    %v1428 = vunpack.c.l.b16 %v1152
    %v1429 = vunpack.c.l.b16 %v1153
    %v1430 = vunpack.c.h.b16 %v1153
    %v1431 = vunpack.c.l.b16 %v1154
    %v1432 = vunpack.c.l.b16 %v1155
    %v1433 = vunpack.c.h.b16 %v1155
    %v1434 = vunpack.c.l.b16 %v1156
    %v1435 = vunpack.c.l.b16 %v1157
    %v1436 = vunpack.c.h.b16 %v1157
    %v1437 = vunpack.c.l.b16 %v1158
    %v1438 = vunpack.c.l.b16 %v1159
    %v1439 = vunpack.c.h.b16 %v1159
    %v1440 = vunpack.c.l.b16 %v1160
    %v1441 = vunpack.c.l.b16 %v1161
    %v1442 = vunpack.c.h.b16 %v1161
    %v1443 = vunpack.c.l.b16 %v1162
    %v1444 = vunpack.c.l.b16 %v1163
    %v1445 = vunpack.c.h.b16 %v1163
    %v1446 = vunpack.c.l.b16 %v1164
    %v1447 = vunpack.c.l.b16 %v1165
    %v1448 = vunpack.c.h.b16 %v1165
    %v1449 = vunpack.c.l.b16 %v1166
    %v1450 = vunpack.c.l.b16 %v1167
    %v1451 = vunpack.c.h.b16 %v1167
    %v1452 = vunpack.c.l.b16 %v1168
    %v1453 = vunpack.c.l.b16 %v1169
    %v1454 = vunpack.c.h.b16 %v1169
    %v1455 = vunpack.c.l.b16 %v1170
    %v1456 = vunpack.c.l.b16 %v1171
    %v1457 = vunpack.c.h.b16 %v1171
    %v1458 = vunpack.c.l.b16 %v1172
    %v1459 = vunpack.c.l.b16 %v1173
    %v1460 = vunpack.c.h.b16 %v1173
    %v1461 = vunpack.c.l.b16 %v1174
    %v1462 = vunpack.c.l.b16 %v1175
    %v1463 = vunpack.c.h.b16 %v1175
    %v1464 = vunpack.c.l.b16 %v1176
    %v1465 = vunpack.c.l.b16 %v1177
    %v1466 = vunpack.c.h.b16 %v1177
    %v1467 = vunpack.c.l.b16 %v1178
    %v1468 = vunpack.c.l.b16 %v1179
    %v1469 = vunpack.c.h.b16 %v1179
    %v1470 = vunpack.c.l.b16 %v1180
    %v1471 = vunpack.c.l.b16 %v1181
    %v1472 = vunpack.c.h.b16 %v1181
    %v1473 = vunpack.c.l.b16 %v1182
    %v1474 = vunpack.c.l.b16 %v1183
    %v1475 = vunpack.c.h.b16 %v1183
    %v1476 = vunpack.c.l.b16 %v1184
    %v1477 = vunpack.c.l.b16 %v1185
    %v1478 = vunpack.c.h.b16 %v1185
    %v1479 = vunpack.c.l.b16 %v1186
    %v1480 = vunpack.c.l.b16 %v1187
    %v1481 = vunpack.c.h.b16 %v1187
    %v1482 = vunpack.c.l.b16 %v1188
    %v1483 = vunpack.c.l.b16 %v1189
    %v1484 = vunpack.c.h.b16 %v1189
    %v1485 = vunpack.c.l.b16 %v1190
    %v1486 = vunpack.c.l.b16 %v1191
    %v1487 = vunpack.c.h.b16 %v1191
    %v1488 = vunpack.c.l.b16 %v1192
    %v1489 = vunpack.c.l.b16 %v1193
    %v1490 = vunpack.c.h.b16 %v1193
    %v1491 = vunpack.c.l.b16 %v1194
    %v1492 = vunpack.c.l.b16 %v1195
    %v1493 = vunpack.c.h.b16 %v1195
    %v1494 = vunpack.c.l.b16 %v1196
    %v1495 = vunpack.c.l.b16 %v1197
    %v1496 = vunpack.c.h.b16 %v1197
    %v1497 = vunpack.c.l.b16 %v1198
    %v1498 = vunpack.c.l.b16 %v1199
    %v1499 = vunpack.c.h.b16 %v1199
    %v1500 = vunpack.c.l.b16 %v1200
    %v1501 = vunpack.c.l.b16 %v1201
    %v1502 = vunpack.c.h.b16 %v1201
    %v1503 = vunpack.c.l.b16 %v1202
    %v1504 = vunpack.c.l.b16 %v1203
    %v1505 = vunpack.c.h.b16 %v1203
    %v1506 = vunpack.c.l.b16 %v1204
    %v1507 = vunpack.c.l.b16 %v1205
    %v1508 = vunpack.c.h.b16 %v1205
    %v1509 = vunpack.c.l.b16 %v1206
    %v1510 = vunpack.c.l.b16 %v1207
    %v1511 = vunpack.c.h.b16 %v1207
    %v1512 = vunpack.c.l.b16 %v1208
    %v1513 = vunpack.c.l.b16 %v1209
    %v1514 = vunpack.c.h.b16 %v1209
    %v1515 = vunpack.c.l.b16 %v1210
    %v1516 = vunpack.c.l.b16 %v1211
    %v1517 = vunpack.c.h.b16 %v1211
    %v1518 = vunpack.c.l.b16 %v1212
    %v1519 = vunpack.c.l.b16 %v1213
    %v1520 = vunpack.c.h.b16 %v1213
    %v1521 = vunpack.c.l.b16 %v1214
    %v1522 = vunpack.c.l.b16 %v1215
    %v1523 = vunpack.c.h.b16 %v1215
    %v1524 = vunpack.c.l.b16 %v1216
    %v1525 = vunpack.c.l.b16 %v1217
    %v1526 = vunpack.c.h.b16 %v1217
    %v1527 = vunpack.c.l.b16 %v1218
    %v1528 = vunpack.c.l.b16 %v1219
    %v1529 = vunpack.c.h.b16 %v1219
    %v1530 = vunpack.c.l.b16 %v1220
    %v1531 = vunpack.c.l.b16 %v1221
    %v1532 = vunpack.c.h.b16 %v1221
    %v1533 = vunpack.c.l.b16 %v1222
    %v1534 = vunpack.c.l.b16 %v1223
    %v1535 = vunpack.c.h.b16 %v1223
    %v1536 = vunpack.c.l.b16 %v1224
    %v1537 = vunpack.c.l.b16 %v1225
    %v1538 = vunpack.c.h.b16 %v1225
    %v1539 = vunpack.c.l.b16 %v1226
    %v1540 = vunpack.c.l.b16 %v1227
    %v1541 = vunpack.c.h.b16 %v1227
    %v1542 = vunpack.c.l.b16 %v1228
    %v1543 = vunpack.c.l.b16 %v1229
    %v1544 = vunpack.c.h.b16 %v1229
    %v1545 = vunpack.c.l.b16 %v1230
    %v1546 = vunpack.c.l.b16 %v1231
    %v1547 = vunpack.c.h.b16 %v1231
    %v1548 = vunpack.c.l.b16 %v1232
    %v1549 = vunpack.c.l.b16 %v1233
    %v1550 = vunpack.c.h.b16 %v1233
    %v1551 = vunpack.c.l.b16 %v1234
    %v1552 = vunpack.c.l.b16 %v1235
    %v1553 = vunpack.c.h.b16 %v1235
    %v1554 = vunpack.c.l.b16 %v1236
    %v1555 = vunpack.c.l.b16 %v1237
    %v1556 = vunpack.c.h.b16 %v1237
    %v1557 = vunpack.c.l.b16 %v1238
    %v1558 = vunpack.c.l.b16 %v1239
    %v1559 = vunpack.c.h.b16 %v1239
    %v1560 = vunpack.c.l.b16 %v1240
    %v1561 = vpack.c.b16 %v1372, %v1369
    %v1562 = vpack.c.b16 %v1373, %v1370
    %v1563 = vpack.c.b16 %v1374, %v1371
    %v1564 = vpack.c.b16 %v1378, %v1375
    %v1565 = vpack.c.b16 %v1379, %v1376
    %v1566 = vpack.c.b16 %v1380, %v1377
    %v1567 = vpack.c.b16 %v1384, %v1381
    %v1568 = vpack.c.b16 %v1385, %v1382
    %v1569 = vpack.c.b16 %v1386, %v1383
    %v1570 = vpack.c.b16 %v1390, %v1387
    %v1571 = vpack.c.b16 %v1391, %v1388
    %v1572 = vpack.c.b16 %v1392, %v1389
    %v1573 = vpack.c.b16 %v1396, %v1393
    %v1574 = vpack.c.b16 %v1397, %v1394
    %v1575 = vpack.c.b16 %v1398, %v1395
    %v1576 = vpack.c.b16 %v1402, %v1399
    %v1577 = vpack.c.b16 %v1403, %v1400
    %v1578 = vpack.c.b16 %v1404, %v1401
    %v1579 = vpack.c.b16 %v1408, %v1405
    %v1580 = vpack.c.b16 %v1409, %v1406
    %v1581 = vpack.c.b16 %v1410, %v1407
    %v1582 = vpack.c.b16 %v1414, %v1411
    %v1583 = vpack.c.b16 %v1415, %v1412
    %v1584 = vpack.c.b16 %v1416, %v1413
    %v1585 = vpack.c.b16 %v1420, %v1417
    %v1586 = vpack.c.b16 %v1421, %v1418
    %v1587 = vpack.c.b16 %v1422, %v1419
    %v1588 = vpack.c.b16 %v1426, %v1423
    %v1589 = vpack.c.b16 %v1427, %v1424
    %v1590 = vpack.c.b16 %v1428, %v1425
    %v1591 = vpack.c.b16 %v1432, %v1429
    %v1592 = vpack.c.b16 %v1433, %v1430
    %v1593 = vpack.c.b16 %v1434, %v1431
    %v1594 = vpack.c.b16 %v1438, %v1435
    %v1595 = vpack.c.b16 %v1439, %v1436
    %v1596 = vpack.c.b16 %v1440, %v1437
    %v1597 = vpack.c.b16 %v1444, %v1441
    %v1598 = vpack.c.b16 %v1445, %v1442
    %v1599 = vpack.c.b16 %v1446, %v1443
    %v1600 = vpack.c.b16 %v1450, %v1447
    %v1601 = vpack.c.b16 %v1451, %v1448
    %v1602 = vpack.c.b16 %v1452, %v1449
    %v1603 = vpack.c.b16 %v1456, %v1453
    %v1604 = vpack.c.b16 %v1457, %v1454
    %v1605 = vpack.c.b16 %v1458, %v1455
    %v1606 = vpack.c.b16 %v1462, %v1459
    %v1607 = vpack.c.b16 %v1463, %v1460
    %v1608 = vpack.c.b16 %v1464, %v1461
    %v1609 = vpack.c.b16 %v1468, %v1465
    %v1610 = vpack.c.b16 %v1469, %v1466
    %v1611 = vpack.c.b16 %v1470, %v1467
    %v1612 = vpack.c.b16 %v1474, %v1471
    %v1613 = vpack.c.b16 %v1475, %v1472
    %v1614 = vpack.c.b16 %v1476, %v1473
    %v1615 = vpack.c.b16 %v1480, %v1477
    %v1616 = vpack.c.b16 %v1481, %v1478
    %v1617 = vpack.c.b16 %v1482, %v1479
    %v1618 = vpack.c.b16 %v1486, %v1483
    %v1619 = vpack.c.b16 %v1487, %v1484
    %v1620 = vpack.c.b16 %v1488, %v1485
    %v1621 = vpack.c.b16 %v1492, %v1489
    %v1622 = vpack.c.b16 %v1493, %v1490
    %v1623 = vpack.c.b16 %v1494, %v1491
    %v1624 = vpack.c.b16 %v1498, %v1495
    %v1625 = vpack.c.b16 %v1499, %v1496
    %v1626 = vpack.c.b16 %v1500, %v1497
    %v1627 = vpack.c.b16 %v1504, %v1501
    %v1628 = vpack.c.b16 %v1505, %v1502
    %v1629 = vpack.c.b16 %v1506, %v1503
    %v1630 = vpack.c.b16 %v1510, %v1507
    %v1631 = vpack.c.b16 %v1511, %v1508
    %v1632 = vpack.c.b16 %v1512, %v1509
    %v1633 = vpack.c.b16 %v1516, %v1513
    %v1634 = vpack.c.b16 %v1517, %v1514
    %v1635 = vpack.c.b16 %v1518, %v1515
    %v1636 = vpack.c.b16 %v1522, %v1519
    %v1637 = vpack.c.b16 %v1523, %v1520
    %v1638 = vpack.c.b16 %v1524, %v1521
    %v1639 = vpack.c.b16 %v1528, %v1525
    %v1640 = vpack.c.b16 %v1529, %v1526
    %v1641 = vpack.c.b16 %v1530, %v1527
    %v1642 = vpack.c.b16 %v1534, %v1531
    %v1643 = vpack.c.b16 %v1535, %v1532
    %v1644 = vpack.c.b16 %v1536, %v1533
    %v1645 = vpack.c.b16 %v1540, %v1537
    %v1646 = vpack.c.b16 %v1541, %v1538
    %v1647 = vpack.c.b16 %v1542, %v1539
    %v1648 = vpack.c.b16 %v1546, %v1543
    %v1649 = vpack.c.b16 %v1547, %v1544
    %v1650 = vpack.c.b16 %v1548, %v1545
    %v1651 = vpack.c.b16 %v1552, %v1549
    %v1652 = vpack.c.b16 %v1553, %v1550
    %v1653 = vpack.c.b16 %v1554, %v1551
    %v1654 = vpack.c.b16 %v1558, %v1555
    %v1655 = vpack.c.b16 %v1559, %v1556
    %v1656 = vpack.c.b16 %v1560, %v1557
    %1753 = vmatprep.subr.bf16.mxu0 %v1562
    %1754 = vmatpush1.bf16.msra.mxu0 %v1561
    %1755 = vmatprep.subr.bf16.mxu0 %v1565
    %1756 = vmatpush1.bf16.msra.mxu0 %v1564
    %1757 = vmatprep.subr.bf16.mxu0 %v1568
    %1758 = vmatpush1.bf16.msra.mxu0 %v1567
    %1759 = vmatprep.subr.bf16.mxu0 %v1571
    %1760 = vmatpush1.bf16.msra.mxu0 %v1570
    %1761 = vmatprep.subr.bf16.mxu0 %v1574
    %1762 = vmatpush1.bf16.msra.mxu0 %v1573
    %1763 = vmatprep.subr.bf16.mxu0 %v1577
    %1764 = vmatpush1.bf16.msra.mxu0 %v1576
    %1765 = vmatprep.subr.bf16.mxu0 %v1580
    %1766 = vmatpush1.bf16.msra.mxu0 %v1579
    %1767 = vmatprep.subr.bf16.mxu0 %v1583
    %1768 = vmatpush1.bf16.msra.mxu0 %v1582
    %1769 = vmatprep.subr.bf16.mxu0 %v1586
    %1770 = vmatpush1.bf16.msra.mxu0 %v1585
    %1771 = vmatprep.subr.bf16.mxu0 %v1589
    %1772 = vmatpush1.bf16.msra.mxu0 %v1588
    %1773 = vmatprep.subr.bf16.mxu0 %v1592
    %1774 = vmatpush1.bf16.msra.mxu0 %v1591
    %1775 = vmatprep.subr.bf16.mxu0 %v1595
    %1776 = vmatpush1.bf16.msra.mxu0 %v1594
    %1777 = vmatprep.subr.bf16.mxu0 %v1598
    %1778 = vmatpush1.bf16.msra.mxu0 %v1597
    %1779 = vmatprep.subr.bf16.mxu0 %v1601
    %1780 = vmatpush1.bf16.msra.mxu0 %v1600
    %1781 = vmatprep.subr.bf16.mxu0 %v1604
    %1782 = vmatpush1.bf16.msra.mxu0 %v1603
    %1783 = vmatprep.subr.bf16.mxu0 %v1607
    %1784 = vmatpush1.bf16.msra.mxu0 %v1606
    %1785 = vmatprep.mubr.bf16.mxu0 %v302
    %1786 = vmatmul.mubr.bf16.gmra.mrb[0].mxu0 %v301
    %v1787 = vpop.f32.mrb[0].mxu0
    %v1788 = vadd.f32 0.0, %v1787
    %v1789 = vpop.f32.mrb[0].mxu0
    %v1790 = vadd.f32 0.0, %v1789
    %v1791 = vpop.f32.mrb[0].mxu0
    %v1792 = vpop.f32.mrb[0].mxu0
    %1793 = vdwg.mxu0
    %1794 = vmatprep.subr.bf16.mxu0 %v1610
    %1795 = vmatpush1.bf16.msra.mxu0 %v1609
    %1796 = vmatprep.subr.bf16.mxu0 %v1613
    %1797 = vmatpush1.bf16.msra.mxu0 %v1612
    %1798 = vmatprep.subr.bf16.mxu0 %v1616
    %1799 = vmatpush1.bf16.msra.mxu0 %v1615
    %1800 = vmatprep.subr.bf16.mxu0 %v1619
    %1801 = vmatpush1.bf16.msra.mxu0 %v1618
    %1802 = vmatprep.subr.bf16.mxu0 %v1622
    %1803 = vmatpush1.bf16.msra.mxu0 %v1621
    %1804 = vmatprep.subr.bf16.mxu0 %v1625
    %1805 = vmatpush1.bf16.msra.mxu0 %v1624
    %1806 = vmatprep.subr.bf16.mxu0 %v1628
    %1807 = vmatpush1.bf16.msra.mxu0 %v1627
    %1808 = vmatprep.subr.bf16.mxu0 %v1631
    %1809 = vmatpush1.bf16.msra.mxu0 %v1630
    %1810 = vmatprep.subr.bf16.mxu0 %v1634
    %1811 = vmatpush1.bf16.msra.mxu0 %v1633
    %1812 = vmatprep.subr.bf16.mxu0 %v1637
    %1813 = vmatpush1.bf16.msra.mxu0 %v1636
    %1814 = vmatprep.subr.bf16.mxu0 %v1640
    %1815 = vmatpush1.bf16.msra.mxu0 %v1639
    %1816 = vmatprep.subr.bf16.mxu0 %v1643
    %1817 = vmatpush1.bf16.msra.mxu0 %v1642
    %1818 = vmatprep.subr.bf16.mxu0 %v1646
    %1819 = vmatpush1.bf16.msra.mxu0 %v1645
    %1820 = vmatprep.subr.bf16.mxu0 %v1649
    %1821 = vmatpush1.bf16.msra.mxu0 %v1648
    %1822 = vmatprep.subr.bf16.mxu0 %v1652
    %1823 = vmatpush1.bf16.msra.mxu0 %v1651
    %1824 = vmatprep.subr.bf16.mxu0 %v1655
    %1825 = vmatpush1.bf16.msra.mxu0 %v1654
    %1826 = vmatprep.mubr.bf16.mxu0 %v304
    %1827 = vmatmul.mubr.bf16.gmra.mrb[0].mxu0 %v303
    %v1828 = vpop.f32.mrb[0].mxu0
    %v1829 = vadd.f32 %v1788, %v1828
    %v1830 = vpop.f32.mrb[0].mxu0
    %v1831 = vadd.f32 %v1790, %v1830
    %v1832 = vpop.f32.mrb[0].mxu0
    %v1833 = vpop.f32.mrb[0].mxu0
    %1834 = vdwg.mxu0
    %1835 = vmatprep.subr.bf16.mxu0 0
    %1836 = vmatpush1.bf16.msra.mxu0 %v1563
    %1837 = vmatprep.subr.bf16.mxu0 0
    %1838 = vmatpush1.bf16.msra.mxu0 %v1566
    %1839 = vmatprep.subr.bf16.mxu0 0
    %1840 = vmatpush1.bf16.msra.mxu0 %v1569
    %1841 = vmatprep.subr.bf16.mxu0 0
    %1842 = vmatpush1.bf16.msra.mxu0 %v1572
    %1843 = vmatprep.subr.bf16.mxu0 0
    %1844 = vmatpush1.bf16.msra.mxu0 %v1575
    %1845 = vmatprep.subr.bf16.mxu0 0
    %1846 = vmatpush1.bf16.msra.mxu0 %v1578
    %1847 = vmatprep.subr.bf16.mxu0 0
    %1848 = vmatpush1.bf16.msra.mxu0 %v1581
    %1849 = vmatprep.subr.bf16.mxu0 0
    %1850 = vmatpush1.bf16.msra.mxu0 %v1584
    %1851 = vmatprep.subr.bf16.mxu0 0
    %1852 = vmatpush1.bf16.msra.mxu0 %v1587
    %1853 = vmatprep.subr.bf16.mxu0 0
    %1854 = vmatpush1.bf16.msra.mxu0 %v1590
    %1855 = vmatprep.subr.bf16.mxu0 0
    %1856 = vmatpush1.bf16.msra.mxu0 %v1593
    %1857 = vmatprep.subr.bf16.mxu0 0
    %1858 = vmatpush1.bf16.msra.mxu0 %v1596
    %1859 = vmatprep.subr.bf16.mxu0 0
    %1860 = vmatpush1.bf16.msra.mxu0 %v1599
    %1861 = vmatprep.subr.bf16.mxu0 0
    %1862 = vmatpush1.bf16.msra.mxu0 %v1602
    %1863 = vmatprep.subr.bf16.mxu0 0
    %1864 = vmatpush1.bf16.msra.mxu0 %v1605
    %1865 = vmatprep.subr.bf16.mxu0 0
    %1866 = vmatpush1.bf16.msra.mxu0 %v1608
    %1867 = vmatprep.mubr.bf16.mxu0 %v302
    %1868 = vmatmul.mubr.bf16.gmra.mrb[0].mxu0 %v301
    %v1869 = vpop.f32.mrb[0].mxu0
    %v1870 = vadd.f32 0.0, %v1869
    %v1871 = vpop.f32.mrb[0].mxu0
    %v1872 = vpop.f32.mrb[0].mxu0
    %v1873 = vpop.f32.mrb[0].mxu0
    %1874 = vdwg.mxu0
    %1875 = vmatprep.subr.bf16.mxu0 0
    %1876 = vmatpush1.bf16.msra.mxu0 %v1611
    %1877 = vmatprep.subr.bf16.mxu0 0
    %1878 = vmatpush1.bf16.msra.mxu0 %v1614
    %1879 = vmatprep.subr.bf16.mxu0 0
    %1880 = vmatpush1.bf16.msra.mxu0 %v1617
    %1881 = vmatprep.subr.bf16.mxu0 0
    %1882 = vmatpush1.bf16.msra.mxu0 %v1620
    %1883 = vmatprep.subr.bf16.mxu0 0
    %1884 = vmatpush1.bf16.msra.mxu0 %v1623
    %1885 = vmatprep.subr.bf16.mxu0 0
    %1886 = vmatpush1.bf16.msra.mxu0 %v1626
    %1887 = vmatprep.subr.bf16.mxu0 0
    %1888 = vmatpush1.bf16.msra.mxu0 %v1629
    %1889 = vmatprep.subr.bf16.mxu0 0
    %1890 = vmatpush1.bf16.msra.mxu0 %v1632
    %1891 = vmatprep.subr.bf16.mxu0 0
    %1892 = vmatpush1.bf16.msra.mxu0 %v1635
    %1893 = vmatprep.subr.bf16.mxu0 0
    %1894 = vmatpush1.bf16.msra.mxu0 %v1638
    %1895 = vmatprep.subr.bf16.mxu0 0
    %1896 = vmatpush1.bf16.msra.mxu0 %v1641
    %1897 = vmatprep.subr.bf16.mxu0 0
    %1898 = vmatpush1.bf16.msra.mxu0 %v1644
    %1899 = vmatprep.subr.bf16.mxu0 0
    %1900 = vmatpush1.bf16.msra.mxu0 %v1647
    %1901 = vmatprep.subr.bf16.mxu0 0
    %1902 = vmatpush1.bf16.msra.mxu0 %v1650
    %1903 = vmatprep.subr.bf16.mxu0 0
    %1904 = vmatpush1.bf16.msra.mxu0 %v1653
    %1905 = vmatprep.subr.bf16.mxu0 0
    %1906 = vmatpush1.bf16.msra.mxu0 %v1656
    %1907 = vmatprep.mubr.bf16.mxu0 %v304
    %1908 = vmatmul.mubr.bf16.gmra.mrb[0].mxu0 %v303
    %v1909 = vpop.f32.mrb[0].mxu0
    %v1910 = vadd.f32 %v1870, %v1909
    %v1911 = vpop.f32.mrb[0].mxu0
    %v1912 = vpop.f32.mrb[0].mxu0
    %v1913 = vpop.f32.mrb[0].mxu0
    %1914 = vdwg.mxu0
    %v1915 = vpack.c.bf16 %v1829, %v1829
    %v1916 = vpack.c.bf16 %v1831, %v1831
    %v1917 = vpack.c.bf16 %v1910, %v1910
    %v1918 = vmax.bf16 %v1915, 0
    %v1919 = vmax.bf16 %v1916, 0
    %v1920 = vmax.bf16 %v1917, 0
    %v1921 = vld [vmem:[%s4] sm:$0xf]
    %v1922 = vld [vmem:[%s4 + $0x4] sm:$0xf]
    %v1923 = vld [vmem:[%s4 + $0x8] sm:$0xf]
    %v1924 = vld [vmem:[%s4 + $0xc] sm:$0xf]
    %v1925 = vld [vmem:[%s4 + $0x10] sm:$0xf]
    %v1926 = vld [vmem:[%s4 + $0x14] sm:$0xf]
    %v1927 = vld [vmem:[%s4 + $0x18] sm:$0xf]
    %v1928 = vld [vmem:[%s4 + $0x1c] sm:$0xf]
    %v1929 = vld [vmem:[%s4 + $0x20] sm:$0xf]
    %v1930 = vld [vmem:[%s4 + $0x24] sm:$0xf]
    %v1931 = vld [vmem:[%s4 + $0x28] sm:$0xf]
    %v1932 = vld [vmem:[%s4 + $0x2c] sm:$0xf]
    %v1933 = vld [vmem:[%s4 + $0x30] sm:$0xf]
    %v1934 = vld [vmem:[%s4 + $0x34] sm:$0xf]
    %v1935 = vld [vmem:[%s4 + $0x38] sm:$0xf]
    %v1936 = vld [vmem:[%s4 + $0x3c] sm:$0xf]
    %v1937 = vld [vmem:[%s4 + $0x40] sm:$0xf]
    %v1938 = vld [vmem:[%s4 + $0x44] sm:$0xf]
    %v1939 = vld [vmem:[%s4 + $0x48] sm:$0xf]
    %v1940 = vld [vmem:[%s4 + $0x4c] sm:$0xf]
    %v1941 = vld [vmem:[%s4 + $0x50] sm:$0xf]
    %v1942 = vld [vmem:[%s4 + $0x54] sm:$0xf]
    %v1943 = vld [vmem:[%s4 + $0x58] sm:$0xf]
    %v1944 = vld [vmem:[%s4 + $0x5c] sm:$0xf]
    %v1945 = vld [vmem:[%s4 + $0x60] sm:$0xf]
    %v1946 = vld [vmem:[%s4 + $0x64] sm:$0xf]
    %v1947 = vld [vmem:[%s4 + $0x68] sm:$0xf]
    %v1948 = vld [vmem:[%s4 + $0x6c] sm:$0xf]
    %v1949 = vld [vmem:[%s4 + $0x70] sm:$0xf]
    %v1950 = vld [vmem:[%s4 + $0x74] sm:$0xf]
    %v1951 = vld [vmem:[%s4 + $0x78] sm:$0xf]
    %v1952 = vld [vmem:[%s4 + $0x7c] sm:$0xf]
    %v1953 = vld [vmem:[%s4 + $0x80] sm:$0xf]
    %v1954 = vld [vmem:[%s4 + $0x84] sm:$0xf]
    %v1955 = vld [vmem:[%s4 + $0x88] sm:$0xf]
    %v1956 = vld [vmem:[%s4 + $0x8c] sm:$0xf]
    %v1957 = vld [vmem:[%s4 + $0x90] sm:$0xf]
    %v1958 = vld [vmem:[%s4 + $0x94] sm:$0xf]
    %v1959 = vld [vmem:[%s4 + $0x98] sm:$0xf]
    %v1960 = vld [vmem:[%s4 + $0x9c] sm:$0xf]
    %v1961 = vld [vmem:[%s4 + $0xa0] sm:$0xf]
    %v1962 = vld [vmem:[%s4 + $0xa4] sm:$0xf]
    %v1963 = vld [vmem:[%s4 + $0xa8] sm:$0xf]
    %v1964 = vld [vmem:[%s4 + $0xac] sm:$0xf]
    %v1965 = vld [vmem:[%s4 + $0xb0] sm:$0xf]
    %v1966 = vld [vmem:[%s4 + $0xb4] sm:$0xf]
    %v1967 = vld [vmem:[%s4 + $0xb8] sm:$0xf]
    %v1968 = vld [vmem:[%s4 + $0xbc] sm:$0xf]
    %v1969 = vld [vmem:[%s5] sm:$0xf]
    %v1970 = vld [vmem:[%s5 + $0x4] sm:$0xf]
    %v1971 = vld [vmem:[%s5 + $0x8] sm:$0xf]
    %v1972 = vld [vmem:[%s5 + $0xc] sm:$0xf]
    %v1973 = vld [vmem:[%s5 + $0x10] sm:$0xf]
    %v1974 = vld [vmem:[%s5 + $0x14] sm:$0xf]
    %v1975 = vld [vmem:[%s5 + $0x18] sm:$0xf]
    %v1976 = vld [vmem:[%s5 + $0x1c] sm:$0xf]
    %v1977 = vld [vmem:[%s5 + $0x20] sm:$0xf]
    %v1978 = vld [vmem:[%s5 + $0x24] sm:$0xf]
    %v1979 = vld [vmem:[%s5 + $0x28] sm:$0xf]
    %v1980 = vld [vmem:[%s5 + $0x2c] sm:$0xf]
    %v1981 = vld [vmem:[%s5 + $0x30] sm:$0xf]
    %v1982 = vld [vmem:[%s5 + $0x34] sm:$0xf]
    %v1983 = vld [vmem:[%s5 + $0x38] sm:$0xf]
    %v1984 = vld [vmem:[%s5 + $0x3c] sm:$0xf]
    %v1985 = vld [vmem:[%s5 + $0x40] sm:$0xf]
    %v1986 = vld [vmem:[%s5 + $0x44] sm:$0xf]
    %v1987 = vld [vmem:[%s5 + $0x48] sm:$0xf]
    %v1988 = vld [vmem:[%s5 + $0x4c] sm:$0xf]
    %v1989 = vld [vmem:[%s5 + $0x50] sm:$0xf]
    %v1990 = vld [vmem:[%s5 + $0x54] sm:$0xf]
    %v1991 = vld [vmem:[%s5 + $0x58] sm:$0xf]
    %v1992 = vld [vmem:[%s5 + $0x5c] sm:$0xf]
    %v1993 = vld [vmem:[%s5 + $0x60] sm:$0xf]
    %v1994 = vld [vmem:[%s5 + $0x64] sm:$0xf]
    %v1995 = vld [vmem:[%s5 + $0x68] sm:$0xf]
    %v1996 = vld [vmem:[%s5 + $0x6c] sm:$0xf]
    %v1997 = vld [vmem:[%s5 + $0x70] sm:$0xf]
    %v1998 = vld [vmem:[%s5 + $0x74] sm:$0xf]
    %v1999 = vld [vmem:[%s5 + $0x78] sm:$0xf]
    %v2000 = vld [vmem:[%s5 + $0x7c] sm:$0xf]
    %v2001 = vld [vmem:[%s5 + $0x80] sm:$0xf]
    %v2002 = vld [vmem:[%s5 + $0x84] sm:$0xf]
    %v2003 = vld [vmem:[%s5 + $0x88] sm:$0xf]
    %v2004 = vld [vmem:[%s5 + $0x8c] sm:$0xf]
    %v2005 = vld [vmem:[%s5 + $0x90] sm:$0xf]
    %v2006 = vld [vmem:[%s5 + $0x94] sm:$0xf]
    %v2007 = vld [vmem:[%s5 + $0x98] sm:$0xf]
    %v2008 = vld [vmem:[%s5 + $0x9c] sm:$0xf]
    %v2009 = vld [vmem:[%s5 + $0xa0] sm:$0xf]
    %v2010 = vld [vmem:[%s5 + $0xa4] sm:$0xf]
    %v2011 = vld [vmem:[%s5 + $0xa8] sm:$0xf]
    %v2012 = vld [vmem:[%s5 + $0xac] sm:$0xf]
    %v2013 = vld [vmem:[%s5 + $0xb0] sm:$0xf]
    %v2014 = vld [vmem:[%s5 + $0xb4] sm:$0xf]
    %v2015 = vld [vmem:[%s5 + $0xb8] sm:$0xf]
    %v2016 = vld [vmem:[%s5 + $0xbc] sm:$0xf]
    %v2065 = vunpack.c.l.b16 %v1969
    %v2066 = vunpack.c.l.b16 %v1970
    %v2067 = vunpack.c.l.b16 %v1971
    %v2068 = vunpack.c.l.b16 %v1972
    %v2069 = vunpack.c.l.b16 %v1973
    %v2070 = vunpack.c.l.b16 %v1974
    %v2071 = vunpack.c.l.b16 %v1975
    %v2072 = vunpack.c.l.b16 %v1976
    %v2073 = vunpack.c.l.b16 %v1977
    %v2074 = vunpack.c.l.b16 %v1978
    %v2075 = vunpack.c.l.b16 %v1979
    %v2076 = vunpack.c.l.b16 %v1980
    %v2077 = vunpack.c.l.b16 %v1981
    %v2078 = vunpack.c.l.b16 %v1982
    %v2079 = vunpack.c.l.b16 %v1983
    %v2080 = vunpack.c.l.b16 %v1984
    %v2081 = vunpack.c.l.b16 %v1985
    %v2082 = vunpack.c.l.b16 %v1986
    %v2083 = vunpack.c.l.b16 %v1987
    %v2084 = vunpack.c.l.b16 %v1988
    %v2085 = vunpack.c.l.b16 %v1989
    %v2086 = vunpack.c.l.b16 %v1990
    %v2087 = vunpack.c.l.b16 %v1991
    %v2088 = vunpack.c.l.b16 %v1992
    %v2089 = vunpack.c.l.b16 %v1993
    %v2090 = vunpack.c.l.b16 %v1994
    %v2091 = vunpack.c.l.b16 %v1995
    %v2092 = vunpack.c.l.b16 %v1996
    %v2093 = vunpack.c.l.b16 %v1997
    %v2094 = vunpack.c.l.b16 %v1998
    %v2095 = vunpack.c.l.b16 %v1999
    %v2096 = vunpack.c.l.b16 %v2000
    %v2097 = vunpack.c.l.b16 %v2001
    %v2098 = vunpack.c.l.b16 %v2002
    %v2099 = vunpack.c.l.b16 %v2003
    %v2100 = vunpack.c.l.b16 %v2004
    %v2101 = vunpack.c.l.b16 %v2005
    %v2102 = vunpack.c.l.b16 %v2006
    %v2103 = vunpack.c.l.b16 %v2007
    %v2104 = vunpack.c.l.b16 %v2008
    %v2105 = vunpack.c.l.b16 %v2009
    %v2106 = vunpack.c.l.b16 %v2010
    %v2107 = vunpack.c.l.b16 %v2011
    %v2108 = vunpack.c.l.b16 %v2012
    %v2109 = vunpack.c.l.b16 %v2013
    %v2110 = vunpack.c.l.b16 %v2014
    %v2111 = vunpack.c.l.b16 %v2015
    %v2112 = vunpack.c.l.b16 %v2016
    %v2113 = vpack.c.b16 %v2066, %v2065
    %v2114 = vpack.c.b16 %v2068, %v2067
    %v2115 = vpack.c.b16 %v2070, %v2069
    %v2116 = vpack.c.b16 %v2072, %v2071
    %v2117 = vpack.c.b16 %v2074, %v2073
    %v2118 = vpack.c.b16 %v2076, %v2075
    %v2119 = vpack.c.b16 %v2078, %v2077
    %v2120 = vpack.c.b16 %v2080, %v2079
    %v2121 = vpack.c.b16 %v2082, %v2081
    %v2122 = vpack.c.b16 %v2084, %v2083
    %v2123 = vpack.c.b16 %v2086, %v2085
    %v2124 = vpack.c.b16 %v2088, %v2087
    %v2125 = vpack.c.b16 %v2090, %v2089
    %v2126 = vpack.c.b16 %v2092, %v2091
    %v2127 = vpack.c.b16 %v2094, %v2093
    %v2128 = vpack.c.b16 %v2096, %v2095
    %v2129 = vpack.c.b16 %v2098, %v2097
    %v2130 = vpack.c.b16 %v2100, %v2099
    %v2131 = vpack.c.b16 %v2102, %v2101
    %v2132 = vpack.c.b16 %v2104, %v2103
    %v2133 = vpack.c.b16 %v2106, %v2105
    %v2134 = vpack.c.b16 %v2108, %v2107
    %v2135 = vpack.c.b16 %v2110, %v2109
    %v2136 = vpack.c.b16 %v2112, %v2111
    %2161 = vmatprep.subr.bf16.mxu0 0
    %2162 = vmatpush1.bf16.msra.mxu0 %v2113
    %2163 = vmatprep.subr.bf16.mxu0 0
    %2164 = vmatpush1.bf16.msra.mxu0 %v2114
    %2165 = vmatprep.subr.bf16.mxu0 0
    %2166 = vmatpush1.bf16.msra.mxu0 %v2115
    %2167 = vmatprep.subr.bf16.mxu0 0
    %2168 = vmatpush1.bf16.msra.mxu0 %v2116
    %2169 = vmatprep.subr.bf16.mxu0 0
    %2170 = vmatpush1.bf16.msra.mxu0 %v2117
    %2171 = vmatprep.subr.bf16.mxu0 0
    %2172 = vmatpush1.bf16.msra.mxu0 %v2118
    %2173 = vmatprep.subr.bf16.mxu0 0
    %2174 = vmatpush1.bf16.msra.mxu0 %v2119
    %2175 = vmatprep.subr.bf16.mxu0 0
    %2176 = vmatpush1.bf16.msra.mxu0 %v2120
    %2177 = vmatprep.subr.bf16.mxu0 0
    %2178 = vmatpush1.bf16.msra.mxu0 %v2121
    %2179 = vmatprep.subr.bf16.mxu0 0
    %2180 = vmatpush1.bf16.msra.mxu0 %v2122
    %2181 = vmatprep.subr.bf16.mxu0 0
    %2182 = vmatpush1.bf16.msra.mxu0 %v2123
    %2183 = vmatprep.subr.bf16.mxu0 0
    %2184 = vmatpush1.bf16.msra.mxu0 %v2124
    %2185 = vmatprep.subr.bf16.mxu0 0
    %2186 = vmatpush1.bf16.msra.mxu0 %v2125
    %2187 = vmatprep.subr.bf16.mxu0 0
    %2188 = vmatpush1.bf16.msra.mxu0 %v2126
    %2189 = vmatprep.subr.bf16.mxu0 0
    %2190 = vmatpush1.bf16.msra.mxu0 %v2127
    %2191 = vmatprep.subr.bf16.mxu0 0
    %2192 = vmatpush1.bf16.msra.mxu0 %v2128
    %2193 = vmatprep.mubr.bf16.mxu0 %v1919
    %2194 = vmatmul.mubr.bf16.gmra.mrb[0].mxu0 %v1918
    %v2195 = vpop.f32.mrb[0].mxu0
    %v2196 = vadd.f32 0.0, %v2195
    %v2197 = vpop.f32.mrb[0].mxu0
    %v2198 = vpop.f32.mrb[0].mxu0
    %v2199 = vpop.f32.mrb[0].mxu0
    %2200 = vdwg.mxu0
    %2201 = vmatprep.subr.bf16.mxu0 0
    %2202 = vmatpush1.bf16.msra.mxu0 %v2129
    %2203 = vmatprep.subr.bf16.mxu0 0
    %2204 = vmatpush1.bf16.msra.mxu0 %v2130
    %2205 = vmatprep.subr.bf16.mxu0 0
    %2206 = vmatpush1.bf16.msra.mxu0 %v2131
    %2207 = vmatprep.subr.bf16.mxu0 0
    %2208 = vmatpush1.bf16.msra.mxu0 %v2132
    %2209 = vmatprep.subr.bf16.mxu0 0
    %2210 = vmatpush1.bf16.msra.mxu0 %v2133
    %2211 = vmatprep.subr.bf16.mxu0 0
    %2212 = vmatpush1.bf16.msra.mxu0 %v2134
    %2213 = vmatprep.subr.bf16.mxu0 0
    %2214 = vmatpush1.bf16.msra.mxu0 %v2135
    %2215 = vmatprep.subr.bf16.mxu0 0
    %2216 = vmatpush1.bf16.msra.mxu0 %v2136
    %2217 = vmatprep.subr.bf16.mxu0 0
    %2218 = vmatpush1.bf16.msra.mxu0 0
    %2219 = vmatprep.subr.bf16.mxu0 0
    %2220 = vmatpush1.bf16.msra.mxu0 0
    %2221 = vmatprep.subr.bf16.mxu0 0
    %2222 = vmatpush1.bf16.msra.mxu0 0
    %2223 = vmatprep.subr.bf16.mxu0 0
    %2224 = vmatpush1.bf16.msra.mxu0 0
    %2225 = vmatprep.subr.bf16.mxu0 0
    %2226 = vmatpush1.bf16.msra.mxu0 0
    %2227 = vmatprep.subr.bf16.mxu0 0
    %2228 = vmatpush1.bf16.msra.mxu0 0
    %2229 = vmatprep.subr.bf16.mxu0 0
    %2230 = vmatpush1.bf16.msra.mxu0 0
    %2231 = vmatprep.subr.bf16.mxu0 0
    %2232 = vmatpush1.bf16.msra.mxu0 0
    %2233 = vmatprep.mubr.bf16.mxu0 0
    %2234 = vmatmul.mubr.bf16.gmra.mrb[0].mxu0 %v1920
    %v2235 = vpop.f32.mrb[0].mxu0
    %v2236 = vadd.f32 %v2196, %v2235
    %v2237 = vpop.f32.mrb[0].mxu0
    %v2238 = vpop.f32.mrb[0].mxu0
    %v2239 = vpop.f32.mrb[0].mxu0
    %2240 = vdwg.mxu0
    %v2289 = vunpack.c.l.b16 %v1921
    %v2290 = vunpack.c.l.b16 %v1922
    %v2291 = vunpack.c.l.b16 %v1923
    %v2292 = vunpack.c.l.b16 %v1924
    %v2293 = vunpack.c.l.b16 %v1925
    %v2294 = vunpack.c.l.b16 %v1926
    %v2295 = vunpack.c.l.b16 %v1927
    %v2296 = vunpack.c.l.b16 %v1928
    %v2297 = vunpack.c.l.b16 %v1929
    %v2298 = vunpack.c.l.b16 %v1930
    %v2299 = vunpack.c.l.b16 %v1931
    %v2300 = vunpack.c.l.b16 %v1932
    %v2301 = vunpack.c.l.b16 %v1933
    %v2302 = vunpack.c.l.b16 %v1934
    %v2303 = vunpack.c.l.b16 %v1935
    %v2304 = vunpack.c.l.b16 %v1936
    %v2305 = vunpack.c.l.b16 %v1937
    %v2306 = vunpack.c.l.b16 %v1938
    %v2307 = vunpack.c.l.b16 %v1939
    %v2308 = vunpack.c.l.b16 %v1940
    %v2309 = vunpack.c.l.b16 %v1941
    %v2310 = vunpack.c.l.b16 %v1942
    %v2311 = vunpack.c.l.b16 %v1943
    %v2312 = vunpack.c.l.b16 %v1944
    %v2313 = vunpack.c.l.b16 %v1945
    %v2314 = vunpack.c.l.b16 %v1946
    %v2315 = vunpack.c.l.b16 %v1947
    %v2316 = vunpack.c.l.b16 %v1948
    %v2317 = vunpack.c.l.b16 %v1949
    %v2318 = vunpack.c.l.b16 %v1950
    %v2319 = vunpack.c.l.b16 %v1951
    %v2320 = vunpack.c.l.b16 %v1952
    %v2321 = vunpack.c.l.b16 %v1953
    %v2322 = vunpack.c.l.b16 %v1954
    %v2323 = vunpack.c.l.b16 %v1955
    %v2324 = vunpack.c.l.b16 %v1956
    %v2325 = vunpack.c.l.b16 %v1957
    %v2326 = vunpack.c.l.b16 %v1958
    %v2327 = vunpack.c.l.b16 %v1959
    %v2328 = vunpack.c.l.b16 %v1960
    %v2329 = vunpack.c.l.b16 %v1961
    %v2330 = vunpack.c.l.b16 %v1962
    %v2331 = vunpack.c.l.b16 %v1963
    %v2332 = vunpack.c.l.b16 %v1964
    %v2333 = vunpack.c.l.b16 %v1965
    %v2334 = vunpack.c.l.b16 %v1966
    %v2335 = vunpack.c.l.b16 %v1967
    %v2336 = vunpack.c.l.b16 %v1968
    %v2337 = vpack.c.b16 %v2290, %v2289
    %v2338 = vpack.c.b16 %v2292, %v2291
    %v2339 = vpack.c.b16 %v2294, %v2293
    %v2340 = vpack.c.b16 %v2296, %v2295
    %v2341 = vpack.c.b16 %v2298, %v2297
    %v2342 = vpack.c.b16 %v2300, %v2299
    %v2343 = vpack.c.b16 %v2302, %v2301
    %v2344 = vpack.c.b16 %v2304, %v2303
    %v2345 = vpack.c.b16 %v2306, %v2305
    %v2346 = vpack.c.b16 %v2308, %v2307
    %v2347 = vpack.c.b16 %v2310, %v2309
    %v2348 = vpack.c.b16 %v2312, %v2311
    %v2349 = vpack.c.b16 %v2314, %v2313
    %v2350 = vpack.c.b16 %v2316, %v2315
    %v2351 = vpack.c.b16 %v2318, %v2317
    %v2352 = vpack.c.b16 %v2320, %v2319
    %v2353 = vpack.c.b16 %v2322, %v2321
    %v2354 = vpack.c.b16 %v2324, %v2323
    %v2355 = vpack.c.b16 %v2326, %v2325
    %v2356 = vpack.c.b16 %v2328, %v2327
    %v2357 = vpack.c.b16 %v2330, %v2329
    %v2358 = vpack.c.b16 %v2332, %v2331
    %v2359 = vpack.c.b16 %v2334, %v2333
    %v2360 = vpack.c.b16 %v2336, %v2335
    %2385 = vmatprep.subr.bf16.mxu0 0
    %2386 = vmatpush1.bf16.msra.mxu0 %v2337
    %2387 = vmatprep.subr.bf16.mxu0 0
    %2388 = vmatpush1.bf16.msra.mxu0 %v2338
    %2389 = vmatprep.subr.bf16.mxu0 0
    %2390 = vmatpush1.bf16.msra.mxu0 %v2339
    %2391 = vmatprep.subr.bf16.mxu0 0
    %2392 = vmatpush1.bf16.msra.mxu0 %v2340
    %2393 = vmatprep.subr.bf16.mxu0 0
    %2394 = vmatpush1.bf16.msra.mxu0 %v2341
    %2395 = vmatprep.subr.bf16.mxu0 0
    %2396 = vmatpush1.bf16.msra.mxu0 %v2342
    %2397 = vmatprep.subr.bf16.mxu0 0
    %2398 = vmatpush1.bf16.msra.mxu0 %v2343
    %2399 = vmatprep.subr.bf16.mxu0 0
    %2400 = vmatpush1.bf16.msra.mxu0 %v2344
    %2401 = vmatprep.subr.bf16.mxu0 0
    %2402 = vmatpush1.bf16.msra.mxu0 %v2345
    %2403 = vmatprep.subr.bf16.mxu0 0
    %2404 = vmatpush1.bf16.msra.mxu0 %v2346
    %2405 = vmatprep.subr.bf16.mxu0 0
    %2406 = vmatpush1.bf16.msra.mxu0 %v2347
    %2407 = vmatprep.subr.bf16.mxu0 0
    %2408 = vmatpush1.bf16.msra.mxu0 %v2348
    %2409 = vmatprep.subr.bf16.mxu0 0
    %2410 = vmatpush1.bf16.msra.mxu0 %v2349
    %2411 = vmatprep.subr.bf16.mxu0 0
    %2412 = vmatpush1.bf16.msra.mxu0 %v2350
    %2413 = vmatprep.subr.bf16.mxu0 0
    %2414 = vmatpush1.bf16.msra.mxu0 %v2351
    %2415 = vmatprep.subr.bf16.mxu0 0
    %2416 = vmatpush1.bf16.msra.mxu0 %v2352
    %2417 = vmatprep.mubr.bf16.mxu0 %v1111
    %2418 = vmatmul.mubr.bf16.gmra.mrb[0].mxu0 %v1110
    %v2419 = vpop.f32.mrb[0].mxu0
    %v2420 = vadd.f32 %v2236, %v2419
    %v2421 = vpop.f32.mrb[0].mxu0
    %v2422 = vpop.f32.mrb[0].mxu0
    %v2423 = vpop.f32.mrb[0].mxu0
    %2424 = vdwg.mxu0
    %2425 = vmatprep.subr.bf16.mxu0 0
    %2426 = vmatpush1.bf16.msra.mxu0 %v2353
    %2427 = vmatprep.subr.bf16.mxu0 0
    %2428 = vmatpush1.bf16.msra.mxu0 %v2354
    %2429 = vmatprep.subr.bf16.mxu0 0
    %2430 = vmatpush1.bf16.msra.mxu0 %v2355
    %2431 = vmatprep.subr.bf16.mxu0 0
    %2432 = vmatpush1.bf16.msra.mxu0 %v2356
    %2433 = vmatprep.subr.bf16.mxu0 0
    %2434 = vmatpush1.bf16.msra.mxu0 %v2357
    %2435 = vmatprep.subr.bf16.mxu0 0
    %2436 = vmatpush1.bf16.msra.mxu0 %v2358
    %2437 = vmatprep.subr.bf16.mxu0 0
    %2438 = vmatpush1.bf16.msra.mxu0 %v2359
    %2439 = vmatprep.subr.bf16.mxu0 0
    %2440 = vmatpush1.bf16.msra.mxu0 %v2360
    %2441 = vmatprep.subr.bf16.mxu0 0
    %2442 = vmatpush1.bf16.msra.mxu0 0
    %2443 = vmatprep.subr.bf16.mxu0 0
    %2444 = vmatpush1.bf16.msra.mxu0 0
    %2445 = vmatprep.subr.bf16.mxu0 0
    %2446 = vmatpush1.bf16.msra.mxu0 0
    %2447 = vmatprep.subr.bf16.mxu0 0
    %2448 = vmatpush1.bf16.msra.mxu0 0
    %2449 = vmatprep.subr.bf16.mxu0 0
    %2450 = vmatpush1.bf16.msra.mxu0 0
    %2451 = vmatprep.subr.bf16.mxu0 0
    %2452 = vmatpush1.bf16.msra.mxu0 0
    %2453 = vmatprep.subr.bf16.mxu0 0
    %2454 = vmatpush1.bf16.msra.mxu0 0
    %2455 = vmatprep.subr.bf16.mxu0 0
    %2456 = vmatpush1.bf16.msra.mxu0 0
    %2457 = vmatprep.mubr.bf16.mxu0 0
    %2458 = vmatmul.mubr.bf16.gmra.mrb[0].mxu0 %v1112
    %v2459 = vpop.f32.mrb[0].mxu0
    %v2460 = vadd.f32 %v2420, %v2459
    %v2461 = vpop.f32.mrb[0].mxu0
    %v2462 = vpop.f32.mrb[0].mxu0
    %v2463 = vpop.f32.mrb[0].mxu0
    %2464 = vdwg.mxu0
    %vm2465 = vcmask 9216
    %2466 = vst.msk [vmem:[%s6] sm:$0x3] %vm2465, %v2460
    // Predicated region
    $region34: #{critic_forward.1} parent=1 // pred_check
      _
    $region35: #{critic_forward.1} parent=1 // pred_check_branch
      %2468 = sbr.rel (0) target = $region37
    $region36: #{critic_forward.1} parent=1 // pred_region
      _
    $region37: #{critic_forward.1} parent=1 // pred_fallthru
      _
    // Predicated region
    $region38: #{critic_forward.1} parent=1 // pred_check
      _
    $region39: #{critic_forward.1} parent=1 // pred_check_branch
      %2470 = sbr.rel (0) target = $region41
    $region40: #{critic_forward.1} parent=1 // pred_region
      _
    $region41: #{critic_forward.1} parent=1 // pred_fallthru
      _
    %2471 = vsyncpa [#allocation3], 1
    %2472 = vsyncpa [#allocation5], 1

</llo_original>
